<compile_context>
chip_gen: v7x
topology: tpu7x:2x2x1
jax: 0.10.0
libtpu: 0.0.40
codegen_flags: <defaults>
</compile_context>

<pallas_src>
import functools

import jax
import jax.numpy as jnp
import numpy as np
from jax.experimental import pallas as pl
from jax.experimental.pallas import tpu as pltpu

INPUT_DIM = 8     # bike-sharing features after dropping casual/registered/count
OUTPUT_DIM = 1
HIDDEN = (256, 128, 64, 32, 16, 8, 4)
BN_EPS = 1e-5

LANES = 128       # batch axis lives on lanes -> tile granule
TM_MAX = 1024     # max batch columns per grid step

# MXU input dtype. bf16 avoids multi-pass f32 MXU emulation on v5e/v6e/v7x;
# accumulation stays f32 (preferred_element_type) and all elementwise math
# (bias, ReLU, epilogue) stays f32.  Use jnp.float32 for exact f32 parity.
MXU_DTYPE = jnp.bfloat16


def mlp_kernel(x_ref, w1, b1, w23, b23, w45, b45, w67, b67, w8c, b8, o_ref,
               *, mxu_dtype):
    f32 = jnp.float32

    def dense_relu(h, w_ref, b_ref):
        # (dout, din) @ (din, TM) -> (dout, TM); bias is a (dout, 1) column
        # broadcast along the lane (batch) axis.
        y = jnp.dot(w_ref[...], h.astype(mxu_dtype),
                    preferred_element_type=f32) + b_ref[...]
        return jnp.maximum(y, 0.0)

    h = dense_relu(x_ref[...], w1, b1)      # 8   -> 256, relu
    h = dense_relu(h, w23, b23)             # 256 -> 64,  relu   (L2@L3 fused)
    h = dense_relu(h, w45, b45)             # 64  -> 16,  relu   (L4@BN@L5 fused)
    h = dense_relu(h, w67, b67)             # 16  -> 4,   relu   (L6@L7 fused)
    # Final 4 -> 1 layer on the VPU/XLU: lane-dense (4,TM)*(4,1) multiply and a
    # 4-deep sublane reduce instead of a wasted MXU push for 4 MACs per column.
    out = jnp.sum(h * w8c[...], axis=0, keepdims=True) + b8[...]
    o_ref[...] = out.astype(o_ref.dtype)    # lane-dense (1, TM) unmasked store


def fuse_params(layers, bn, mxu_dtype=MXU_DTYPE):
    """Fold consecutive affine ops and return feature-major (transposed) params.

    Call once per parameter update (hoisted out of the per-forward jit path).
    """
    (w1, b1), (w2, b2), (w3, b3), (w4, b4), \
        (w5, b5), (w6, b6), (w7, b7), (w8, b8) = layers
    s = bn["gamma"] * jax.lax.rsqrt(bn["var"] + BN_EPS)   # BN eval scale
    t = bn["beta"] - bn["mean"] * s                       # BN eval shift
    w23 = w2 @ w3
    b23 = b2 @ w3 + b3
    w45 = (w4 * s[None, :]) @ w5
    b45 = (b4 * s + t) @ w5 + b5
    w67 = w6 @ w7
    b67 = b6 @ w7 + b7
    wT = lambda w: jnp.asarray(w.T, mxu_dtype)                       # (dout, din)
    col = lambda b: jnp.asarray(b, jnp.float32).reshape(-1, 1)       # (dout, 1)
    return (wT(w1), col(b1),
            wT(w23), col(b23),
            wT(w45), col(b45),
            wT(w67), col(b67),
            jnp.asarray(w8, jnp.float32).reshape(-1, 1),   # (4, 1) column, VPU epilogue
            jnp.asarray(b8, jnp.float32).reshape(1, 1))


def _num_tensorcores():
    # v5e/v6e expose 1 TensorCore per JAX device; megacore-style parts expose 2.
    try:
        return max(1, min(2, int(getattr(jax.devices()[0], "num_cores", 1))))
    except Exception:  # pragma: no cover - defensive
        return 1


def _round_up(n, m):
    return ((n + m - 1) // m) * m


def _choose_tile(n, n_cores):
    # One tile per TensorCore when possible; the batch (lane) axis only needs
    # 128-alignment, so padding is < 128 rows.  Single-TC parts get one
    # exact-fit tile (no forced second grid step).
    per_core = pl.cdiv(n, max(1, n_cores))
    tm = min(TM_MAX, _round_up(per_core, LANES))
    return tm, pl.cdiv(n, tm)


def mlp_forward(x, fused):
    """x: (N, 8) f32; fused: output of fuse_params. Returns (N, 1) f32."""
    n = x.shape[0]
    tm, grid = _choose_tile(n, _num_tensorcores())
    x_t = x.T                                   # (8, N): batch on the lane axis

    in_specs = [pl.BlockSpec((INPUT_DIM, tm), lambda i: (0, i))]
    for p in fused:
        # Grid-invariant whole-array blocks: constant block index => the fused
        # weights/biases stay resident in VMEM across grid steps.
        in_specs.append(pl.BlockSpec(p.shape, lambda i: (0, 0)))

    out = pl.pallas_call(
        functools.partial(mlp_kernel, mxu_dtype=MXU_DTYPE),
        out_shape=jax.ShapeDtypeStruct((1, n), jnp.float32),
        grid_spec=pl.GridSpec(
            grid=(grid,),
            in_specs=in_specs,
            out_specs=pl.BlockSpec((1, tm), lambda i: (0, i)),
        ),
        compiler_params=pltpu.CompilerParams(
            dimension_semantics=("parallel",)),
    )(x_t, *fused)
    return out.reshape(n, OUTPUT_DIM)


def init_params(key):
    """nn.Linear default init (U[-1/sqrt(in), 1/sqrt(in)]) + BatchNorm1d defaults."""
    dims = (INPUT_DIM,) + HIDDEN + (OUTPUT_DIM,)
    layers = []
    for din, dout in zip(dims[:-1], dims[1:]):
        key, kw, kb = jax.random.split(key, 3)
        bound = 1.0 / np.sqrt(din)
        w = jax.random.uniform(kw, (din, dout), jnp.float32, -bound, bound)
        b = jax.random.uniform(kb, (dout,), jnp.float32, -bound, bound)
        layers.append((w, b))
    bn = dict(gamma=jnp.ones((32,), jnp.float32),
              beta=jnp.zeros((32,), jnp.float32),
              mean=jnp.zeros((32,), jnp.float32),
              var=jnp.ones((32,), jnp.float32))
    return layers, bn


def reference_forward(x, layers, bn):
    """Unfused eval-mode forward matching the PyTorch module layer-by-layer."""
    (w1, b1), (w2, b2), (w3, b3), (w4, b4), \
        (w5, b5), (w6, b6), (w7, b7), (w8, b8) = layers
    h = jnp.maximum(x @ w1 + b1, 0.0)                         # linear1, relu
    h = h @ w2 + b2                                           # linear2 (drop=id)
    h = jnp.maximum(h @ w3 + b3, 0.0)                         # linear3, relu (drop=id)
    h = h @ w4 + b4                                           # linear4
    h = (h - bn["mean"]) * (bn["gamma"]
                            / jnp.sqrt(bn["var"] + BN_EPS)) + bn["beta"]  # bn (eval)
    h = jnp.maximum(h @ w5 + b5, 0.0)                         # linear5, relu (drop=id)
    h = h @ w6 + b6                                           # linear6 (drop=id)
    h = jnp.maximum(h @ w7 + b7, 0.0)                         # linear7, relu
    return h @ w8 + b8                                        # linear8


if __name__ == "__main__":
    key = jax.random.PRNGKey(0)
    key, kx = jax.random.split(key)
    N = 300                    # not a 128-multiple: exercises the ragged tail
    x = jax.random.normal(kx, (N, INPUT_DIM), jnp.float32)
    layers, bn = init_params(key)

    # Affine fusion / transposition runs once, outside the per-call forward.
    fused = fuse_params(layers, bn)
    fwd = jax.jit(mlp_forward)

    out = jax.block_until_ready(fwd(x, fused))
    ref = reference_forward(x, layers, bn)

    # Scale-aware tolerance: bf16 MXU-input path differs from the f32 unfused
    # reference by ~1e-2 of the activation scale; f32 path only by matmul
    # reassociation rounding.
    err = float(jnp.max(jnp.abs(out - ref)))
    scale = float(jnp.maximum(1.0, jnp.max(jnp.abs(ref))))
    tol = 1e-4 if MXU_DTYPE == jnp.float32 else 5e-2
    assert err <= tol * scale, (err, scale)
    assert out.shape == (N, OUTPUT_DIM)
    print("KERNEL_OK")
</pallas_src>

<mosaic_0001>
module attributes {stable_mosaic.version = 11 : i64} {
  func.func @mlp_kernel(%arg0: i32, %arg1: memref<8x384xf32, #tpu.memory_space<vmem>>, %arg2: memref<256x8xbf16, #tpu.memory_space<vmem>>, %arg3: memref<256x1xf32, #tpu.memory_space<vmem>>, %arg4: memref<64x256xbf16, #tpu.memory_space<vmem>>, %arg5: memref<64x1xf32, #tpu.memory_space<vmem>>, %arg6: memref<16x64xbf16, #tpu.memory_space<vmem>>, %arg7: memref<16x1xf32, #tpu.memory_space<vmem>>, %arg8: memref<4x16xbf16, #tpu.memory_space<vmem>>, %arg9: memref<4x1xf32, #tpu.memory_space<vmem>>, %arg10: memref<4x1xf32, #tpu.memory_space<vmem>>, %arg11: memref<1x1xf32, #tpu.memory_space<vmem>>, %arg12: memref<1x384xf32, #tpu.memory_space<vmem>>) attributes {dimension_semantics = [#tpu.dimension_semantics<parallel>], iteration_bounds = array<i64: 1>, scalar_prefetch = 0 : i64, scratch_operands = 0 : i64, tpu.core_type = #tpu.core_type<tc>, window_params = [{transform_indices = @transform_0, window_bounds = array<i64: 8, 384>}, {pipeline_mode = #tpu.pipeline_mode<synchronous>, transform_indices = @transform_1, window_bounds = array<i64: 256, 8>}, {pipeline_mode = #tpu.pipeline_mode<synchronous>, transform_indices = @transform_2, window_bounds = array<i64: 256, 1>}, {pipeline_mode = #tpu.pipeline_mode<synchronous>, transform_indices = @transform_3, window_bounds = array<i64: 64, 256>}, {pipeline_mode = #tpu.pipeline_mode<synchronous>, transform_indices = @transform_4, window_bounds = array<i64: 64, 1>}, {pipeline_mode = #tpu.pipeline_mode<synchronous>, transform_indices = @transform_5, window_bounds = array<i64: 16, 64>}, {pipeline_mode = #tpu.pipeline_mode<synchronous>, transform_indices = @transform_6, window_bounds = array<i64: 16, 1>}, {pipeline_mode = #tpu.pipeline_mode<synchronous>, transform_indices = @transform_7, window_bounds = array<i64: 4, 16>}, {pipeline_mode = #tpu.pipeline_mode<synchronous>, transform_indices = @transform_8, window_bounds = array<i64: 4, 1>}, {pipeline_mode = #tpu.pipeline_mode<synchronous>, transform_indices = @transform_9, window_bounds = array<i64: 4, 1>}, {pipeline_mode = #tpu.pipeline_mode<synchronous>, transform_indices = @transform_10, window_bounds = array<i64: 1, 1>}, {transform_indices = @transform_11, window_bounds = array<i64: 1, 384>}]} {
    %c0 = arith.constant 0 : index
    %c0_0 = arith.constant 0 : index
    %0 = vector.load %arg1[%c0, %c0_0] : memref<8x384xf32, #tpu.memory_space<vmem>>, vector<8x384xf32>
    %c0_1 = arith.constant 0 : index
    %c0_2 = arith.constant 0 : index
    %1 = vector.load %arg2[%c0_1, %c0_2] : memref<256x8xbf16, #tpu.memory_space<vmem>>, vector<256x8xbf16>
    %2 = arith.truncf %0 : vector<8x384xf32> to vector<8x384xbf16>
    %cst = arith.constant dense<0.000000e+00> : vector<256x384xf32>
    %3 = tpu.matmul %1, %2, %cst {dimension_numbers = #tpu.dot_dimension_numbers<[1], [0], [0], [1], [0, 0, 1, 1], [], []>} : vector<256x8xbf16>, vector<8x384xbf16>, vector<256x384xf32> -> vector<256x384xf32>
    %c0_3 = arith.constant 0 : index
    %c0_4 = arith.constant 0 : index
    %4 = vector.load %arg3[%c0_3, %c0_4] : memref<256x1xf32, #tpu.memory_space<vmem>>, vector<256x1xf32>
    %5 = vector.broadcast %4 : vector<256x1xf32> to vector<256x384xf32>
    %6 = arith.addf %3, %5 : vector<256x384xf32>
    %cst_5 = arith.constant 0.000000e+00 : f32
    %7 = vector.broadcast %cst_5 : f32 to vector<256x384xf32>
    %8 = arith.maximumf %6, %7 : vector<256x384xf32>
    %c0_6 = arith.constant 0 : index
    %c0_7 = arith.constant 0 : index
    %9 = vector.load %arg4[%c0_6, %c0_7] : memref<64x256xbf16, #tpu.memory_space<vmem>>, vector<64x256xbf16>
    %10 = arith.truncf %8 : vector<256x384xf32> to vector<256x384xbf16>
    %cst_8 = arith.constant dense<0.000000e+00> : vector<64x384xf32>
    %11 = tpu.matmul %9, %10, %cst_8 {dimension_numbers = #tpu.dot_dimension_numbers<[1], [0], [0], [1], [0, 0, 1, 1], [], []>} : vector<64x256xbf16>, vector<256x384xbf16>, vector<64x384xf32> -> vector<64x384xf32>
    %c0_9 = arith.constant 0 : index
    %c0_10 = arith.constant 0 : index
    %12 = vector.load %arg5[%c0_9, %c0_10] : memref<64x1xf32, #tpu.memory_space<vmem>>, vector<64x1xf32>
    %13 = vector.broadcast %12 : vector<64x1xf32> to vector<64x384xf32>
    %14 = arith.addf %11, %13 : vector<64x384xf32>
    %cst_11 = arith.constant 0.000000e+00 : f32
    %15 = vector.broadcast %cst_11 : f32 to vector<64x384xf32>
    %16 = arith.maximumf %14, %15 : vector<64x384xf32>
    %c0_12 = arith.constant 0 : index
    %c0_13 = arith.constant 0 : index
    %17 = vector.load %arg6[%c0_12, %c0_13] : memref<16x64xbf16, #tpu.memory_space<vmem>>, vector<16x64xbf16>
    %18 = arith.truncf %16 : vector<64x384xf32> to vector<64x384xbf16>
    %cst_14 = arith.constant dense<0.000000e+00> : vector<16x384xf32>
    %19 = tpu.matmul %17, %18, %cst_14 {dimension_numbers = #tpu.dot_dimension_numbers<[1], [0], [0], [1], [0, 0, 1, 1], [], []>} : vector<16x64xbf16>, vector<64x384xbf16>, vector<16x384xf32> -> vector<16x384xf32>
    %c0_15 = arith.constant 0 : index
    %c0_16 = arith.constant 0 : index
    %20 = vector.load %arg7[%c0_15, %c0_16] : memref<16x1xf32, #tpu.memory_space<vmem>>, vector<16x1xf32>
    %21 = vector.broadcast %20 : vector<16x1xf32> to vector<16x384xf32>
    %22 = arith.addf %19, %21 : vector<16x384xf32>
    %cst_17 = arith.constant 0.000000e+00 : f32
    %23 = vector.broadcast %cst_17 : f32 to vector<16x384xf32>
    %24 = arith.maximumf %22, %23 : vector<16x384xf32>
    %c0_18 = arith.constant 0 : index
    %c0_19 = arith.constant 0 : index
    %25 = vector.load %arg8[%c0_18, %c0_19] : memref<4x16xbf16, #tpu.memory_space<vmem>>, vector<4x16xbf16>
    %26 = arith.truncf %24 : vector<16x384xf32> to vector<16x384xbf16>
    %cst_20 = arith.constant dense<0.000000e+00> : vector<4x384xf32>
    %27 = tpu.matmul %25, %26, %cst_20 {dimension_numbers = #tpu.dot_dimension_numbers<[1], [0], [0], [1], [0, 0, 1, 1], [], []>} : vector<4x16xbf16>, vector<16x384xbf16>, vector<4x384xf32> -> vector<4x384xf32>
    %c0_21 = arith.constant 0 : index
    %c0_22 = arith.constant 0 : index
    %28 = vector.load %arg9[%c0_21, %c0_22] : memref<4x1xf32, #tpu.memory_space<vmem>>, vector<4x1xf32>
    %29 = vector.broadcast %28 : vector<4x1xf32> to vector<4x384xf32>
    %30 = arith.addf %27, %29 : vector<4x384xf32>
    %cst_23 = arith.constant 0.000000e+00 : f32
    %31 = vector.broadcast %cst_23 : f32 to vector<4x384xf32>
    %32 = arith.maximumf %30, %31 : vector<4x384xf32>
    %c0_24 = arith.constant 0 : index
    %c0_25 = arith.constant 0 : index
    %33 = vector.load %arg10[%c0_24, %c0_25] : memref<4x1xf32, #tpu.memory_space<vmem>>, vector<4x1xf32>
    %34 = vector.broadcast %33 : vector<4x1xf32> to vector<4x384xf32>
    %35 = arith.mulf %32, %34 : vector<4x384xf32>
    %cst_26 = arith.constant dense<0.000000e+00> : vector<384xf32>
    %36 = vector.multi_reduction <add>, %35, %cst_26 [0] : vector<4x384xf32> to vector<384xf32>
    %37 = vector.shape_cast %36 : vector<384xf32> to vector<1x384xf32>
    %c0_27 = arith.constant 0 : index
    %c0_28 = arith.constant 0 : index
    %38 = vector.load %arg11[%c0_27, %c0_28] : memref<1x1xf32, #tpu.memory_space<vmem>>, vector<1x1xf32>
    %39 = vector.broadcast %38 : vector<1x1xf32> to vector<1x384xf32>
    %40 = arith.addf %37, %39 : vector<1x384xf32>
    %c0_29 = arith.constant 0 : index
    %c0_30 = arith.constant 0 : index
    %41 = vector.load %arg12[%c0_29, %c0_30] : memref<1x384xf32, #tpu.memory_space<vmem>>, vector<1x384xf32>
    tpu.vector_store %arg12[%c0_29, %c0_30], %40 {strides = array<i32>} : memref<1x384xf32, #tpu.memory_space<vmem>>, vector<1x384xf32>,
    return
  }
  func.func @transform_0(%arg0: i32) -> (i32, i32) {
    %c0_i32 = arith.constant 0 : i32
    %c0_i32_0 = arith.constant 0 : i32
    return %c0_i32, %arg0 : i32, i32
  }
  func.func @transform_1(%arg0: i32) -> (i32, i32) {
    %c0_i32 = arith.constant 0 : i32
    %c0_i32_0 = arith.constant 0 : i32
    %c0_i32_1 = arith.constant 0 : i32
    return %c0_i32, %c0_i32_0 : i32, i32
  }
  func.func @transform_2(%arg0: i32) -> (i32, i32) {
    %c0_i32 = arith.constant 0 : i32
    %c0_i32_0 = arith.constant 0 : i32
    %c0_i32_1 = arith.constant 0 : i32
    return %c0_i32, %c0_i32_0 : i32, i32
  }
  func.func @transform_3(%arg0: i32) -> (i32, i32) {
    %c0_i32 = arith.constant 0 : i32
    %c0_i32_0 = arith.constant 0 : i32
    %c0_i32_1 = arith.constant 0 : i32
    return %c0_i32, %c0_i32_0 : i32, i32
  }
  func.func @transform_4(%arg0: i32) -> (i32, i32) {
    %c0_i32 = arith.constant 0 : i32
    %c0_i32_0 = arith.constant 0 : i32
    %c0_i32_1 = arith.constant 0 : i32
    return %c0_i32, %c0_i32_0 : i32, i32
  }
  func.func @transform_5(%arg0: i32) -> (i32, i32) {
    %c0_i32 = arith.constant 0 : i32
    %c0_i32_0 = arith.constant 0 : i32
    %c0_i32_1 = arith.constant 0 : i32
    return %c0_i32, %c0_i32_0 : i32, i32
  }
  func.func @transform_6(%arg0: i32) -> (i32, i32) {
    %c0_i32 = arith.constant 0 : i32
    %c0_i32_0 = arith.constant 0 : i32
    %c0_i32_1 = arith.constant 0 : i32
    return %c0_i32, %c0_i32_0 : i32, i32
  }
  func.func @transform_7(%arg0: i32) -> (i32, i32) {
    %c0_i32 = arith.constant 0 : i32
    %c0_i32_0 = arith.constant 0 : i32
    %c0_i32_1 = arith.constant 0 : i32
    return %c0_i32, %c0_i32_0 : i32, i32
  }
  func.func @transform_8(%arg0: i32) -> (i32, i32) {
    %c0_i32 = arith.constant 0 : i32
    %c0_i32_0 = arith.constant 0 : i32
    %c0_i32_1 = arith.constant 0 : i32
    return %c0_i32, %c0_i32_0 : i32, i32
  }
  func.func @transform_9(%arg0: i32) -> (i32, i32) {
    %c0_i32 = arith.constant 0 : i32
    %c0_i32_0 = arith.constant 0 : i32
    %c0_i32_1 = arith.constant 0 : i32
    return %c0_i32, %c0_i32_0 : i32, i32
  }
  func.func @transform_10(%arg0: i32) -> (i32, i32) {
    %c0_i32 = arith.constant 0 : i32
    %c0_i32_0 = arith.constant 0 : i32
    %c0_i32_1 = arith.constant 0 : i32
    return %c0_i32, %c0_i32_0 : i32, i32
  }
  func.func @transform_11(%arg0: i32) -> (i32, i32) {
    %c0_i32 = arith.constant 0 : i32
    %c0_i32_0 = arith.constant 0 : i32
    return %c0_i32, %arg0 : i32, i32
  }
}

</mosaic_0001>

<llo_original>
// kernel: mlp_forward.1
$region0: #{mlp_forward.1}
  #allocation0 [shape = 'u32[]', space=smem, size = 0x4, offset = 0x4, fixed_abs, tag = 'smem constant byte address 0x4 - core index']
  #allocation1 [shape = 'u32[144,128]{1,0:T(1,128)}', space=vmem, size = 0x12000, scoped, tag = 'internal scratch']
  #allocation2 [shape = 'f32[1,1]{1,0:T(1,128)S(1)}', space=vmem, size = 0x200, scoped, tag = 'scoped memory for mlp_forward.1']
  %s0 = inlined_call_operand.vmem [shape: f32[8,300], index: 0, kind: input, shape index: {}]
  %s1 = inlined_call_operand.vmem [shape: bf16[256,8], index: 1, kind: input, shape index: {}]
  %s2 = inlined_call_operand.vmem [shape: f32[256,1], index: 2, kind: input, shape index: {}]
  %s3 = inlined_call_operand.vmem [shape: bf16[64,256], index: 3, kind: input, shape index: {}]
  %s4 = inlined_call_operand.vmem [shape: f32[64,1], index: 4, kind: input, shape index: {}]
  %s5 = inlined_call_operand.vmem [shape: bf16[16,64], index: 5, kind: input, shape index: {}]
  %s6 = inlined_call_operand.vmem [shape: f32[16,1], index: 6, kind: input, shape index: {}]
  %s7 = inlined_call_operand.vmem [shape: bf16[4,16], index: 7, kind: input, shape index: {}]
  %s8 = inlined_call_operand.vmem [shape: f32[4,1], index: 8, kind: input, shape index: {}]
  %s9 = inlined_call_operand.vmem [shape: f32[4,1], index: 9, kind: input, shape index: {}]
  %s10 = inlined_call_operand.<no memory space> [shape: f32[1,1], index: 10, kind: input, shape index: {}]
  %s11 = inlined_call_operand.hbm [shape: f32[1,300], index: 11, kind: output, shape index: {}]
  %s12 = sld [smem:[#allocation0]]
  $region54: #{mlp_forward.1} parent=0
    _
  %s14 = ssub.s32 1, %s12
  %s15 = scalar_select 0, %s14, %s12
  %v16 = vstv %s10
  %17 = vst [vmem:[#allocation2] sm:$0x1] %v16
  $region1: #{mlp_forward.1} parent=0
    #allocation3 [shape = 'u8[1536]{0}', space=vmem, size = 0x800, scoped, tag = 'output window, operand 0, single buffered']
    #allocation4 [shape = 's32[1]{0}', space=sflag, size = 0x4, scoped, tag = 'scoped memory for mlp_forward.1']
    %18 = vsyncpa [#allocation4], 0
    // Predicated region
    $region2: #{mlp_forward.1} parent=1 // pred_check
      _
    $region3: #{mlp_forward.1} parent=1 // pred_check_branch
      %20 = sbr.rel (0) target = $region5
    $region4: #{mlp_forward.1} parent=1 // pred_region
      _
    $region5: #{mlp_forward.1} parent=1 // pred_fallthru
      _
    // Predicated region
    $region6: #{mlp_forward.1} parent=1 // pred_check
      _
    $region7: #{mlp_forward.1} parent=1 // pred_check_branch
      %22 = sbr.rel (0) target = $region9
    $region8: #{mlp_forward.1} parent=1 // pred_region
      _
    $region9: #{mlp_forward.1} parent=1 // pred_fallthru
      _
    // Predicated region
    $region10: #{mlp_forward.1} parent=1 // pred_check
      _
    $region11: #{mlp_forward.1} parent=1 // pred_check_branch
      %24 = sbr.rel (0) target = $region13
    $region12: #{mlp_forward.1} parent=1 // pred_region
      _
    $region13: #{mlp_forward.1} parent=1 // pred_fallthru
      _
    // Predicated region
    $region14: #{mlp_forward.1} parent=1 // pred_check
      _
    $region15: #{mlp_forward.1} parent=1 // pred_check_branch
      %26 = sbr.rel (0) target = $region17
    $region16: #{mlp_forward.1} parent=1 // pred_region
      _
    $region17: #{mlp_forward.1} parent=1 // pred_fallthru
      _
    // Predicated region
    $region18: #{mlp_forward.1} parent=1 // pred_check
      _
    $region19: #{mlp_forward.1} parent=1 // pred_check_branch
      %28 = sbr.rel (0) target = $region21
    $region20: #{mlp_forward.1} parent=1 // pred_region
      _
    $region21: #{mlp_forward.1} parent=1 // pred_fallthru
      _
    // Predicated region
    $region22: #{mlp_forward.1} parent=1 // pred_check
      _
    $region23: #{mlp_forward.1} parent=1 // pred_check_branch
      %30 = sbr.rel (0) target = $region25
    $region24: #{mlp_forward.1} parent=1 // pred_region
      _
    $region25: #{mlp_forward.1} parent=1 // pred_fallthru
      _
    // Predicated region
    $region26: #{mlp_forward.1} parent=1 // pred_check
      _
    $region27: #{mlp_forward.1} parent=1 // pred_check_branch
      %32 = sbr.rel (0) target = $region29
    $region28: #{mlp_forward.1} parent=1 // pred_region
      _
    $region29: #{mlp_forward.1} parent=1 // pred_fallthru
      _
    // Predicated region
    $region30: #{mlp_forward.1} parent=1 // pred_check
      _
    $region31: #{mlp_forward.1} parent=1 // pred_check_branch
      %34 = sbr.rel (0) target = $region33
    $region32: #{mlp_forward.1} parent=1 // pred_region
      _
    $region33: #{mlp_forward.1} parent=1 // pred_fallthru
      _
    // Predicated region
    $region34: #{mlp_forward.1} parent=1 // pred_check
      _
    $region35: #{mlp_forward.1} parent=1 // pred_check_branch
      %36 = sbr.rel (0) target = $region37
    $region36: #{mlp_forward.1} parent=1 // pred_region
      _
    $region37: #{mlp_forward.1} parent=1 // pred_fallthru
      _
    // Predicated region
    $region38: #{mlp_forward.1} parent=1 // pred_check
      _
    $region39: #{mlp_forward.1} parent=1 // pred_check_branch
      %38 = sbr.rel (0) target = $region41
    $region40: #{mlp_forward.1} parent=1 // pred_region
      _
    $region41: #{mlp_forward.1} parent=1 // pred_fallthru
      _
    // Predicated region
    $region42: #{mlp_forward.1} parent=1 // pred_check
      _
    $region43: #{mlp_forward.1} parent=1 // pred_check_branch
      %40 = sbr.rel (0) target = $region45
    $region44: #{mlp_forward.1} parent=1 // pred_region
      _
    $region45: #{mlp_forward.1} parent=1 // pred_fallthru
      _
    %v42 = vld [vmem:[%s0] sm:$0xff]
    %v43 = vld [vmem:[%s0 + $0x8] sm:$0xff]
    %v44 = vld [vmem:[%s0 + $0x10] sm:$0xff]
    %v45 = vld [vmem:[%s1] sm:$0xf]
    %v46 = vld [vmem:[%s1 + $0x4] sm:$0xf]
    %v47 = vld [vmem:[%s1 + $0x8] sm:$0xf]
    %v48 = vld [vmem:[%s1 + $0xc] sm:$0xf]
    %v49 = vld [vmem:[%s1 + $0x10] sm:$0xf]
    %v50 = vld [vmem:[%s1 + $0x14] sm:$0xf]
    %v51 = vld [vmem:[%s1 + $0x18] sm:$0xf]
    %v52 = vld [vmem:[%s1 + $0x1c] sm:$0xf]
    %v53 = vld [vmem:[%s1 + $0x20] sm:$0xf]
    %v54 = vld [vmem:[%s1 + $0x24] sm:$0xf]
    %v55 = vld [vmem:[%s1 + $0x28] sm:$0xf]
    %v56 = vld [vmem:[%s1 + $0x2c] sm:$0xf]
    %v57 = vld [vmem:[%s1 + $0x30] sm:$0xf]
    %v58 = vld [vmem:[%s1 + $0x34] sm:$0xf]
    %v59 = vld [vmem:[%s1 + $0x38] sm:$0xf]
    %v60 = vld [vmem:[%s1 + $0x3c] sm:$0xf]
    %v61 = vld [vmem:[%s1 + $0x40] sm:$0xf]
    %v62 = vld [vmem:[%s1 + $0x44] sm:$0xf]
    %v63 = vld [vmem:[%s1 + $0x48] sm:$0xf]
    %v64 = vld [vmem:[%s1 + $0x4c] sm:$0xf]
    %v65 = vld [vmem:[%s1 + $0x50] sm:$0xf]
    %v66 = vld [vmem:[%s1 + $0x54] sm:$0xf]
    %v67 = vld [vmem:[%s1 + $0x58] sm:$0xf]
    %v68 = vld [vmem:[%s1 + $0x5c] sm:$0xf]
    %v69 = vld [vmem:[%s1 + $0x60] sm:$0xf]
    %v70 = vld [vmem:[%s1 + $0x64] sm:$0xf]
    %v71 = vld [vmem:[%s1 + $0x68] sm:$0xf]
    %v72 = vld [vmem:[%s1 + $0x6c] sm:$0xf]
    %v73 = vld [vmem:[%s1 + $0x70] sm:$0xf]
    %v74 = vld [vmem:[%s1 + $0x74] sm:$0xf]
    %v75 = vld [vmem:[%s1 + $0x78] sm:$0xf]
    %v76 = vld [vmem:[%s1 + $0x7c] sm:$0xf]
    %v77 = vpack.c.bf16 %v42, %v42
    %v78 = vpack.c.bf16 %v43, %v43
    %v79 = vpack.c.bf16 %v44, %v44
    %v80 = vld [vmem:[%s2] sm:$0xff]
    %v81 = vld [vmem:[%s2 + $0x8] sm:$0xff]
    %v82 = vld [vmem:[%s2 + $0x10] sm:$0xff]
    %v83 = vld [vmem:[%s2 + $0x18] sm:$0xff]
    %v84 = vld [vmem:[%s2 + $0x20] sm:$0xff]
    %v85 = vld [vmem:[%s2 + $0x28] sm:$0xff]
    %v86 = vld [vmem:[%s2 + $0x30] sm:$0xff]
    %v87 = vld [vmem:[%s2 + $0x38] sm:$0xff]
    %v88 = vld [vmem:[%s2 + $0x40] sm:$0xff]
    %v89 = vld [vmem:[%s2 + $0x48] sm:$0xff]
    %v90 = vld [vmem:[%s2 + $0x50] sm:$0xff]
    %v91 = vld [vmem:[%s2 + $0x58] sm:$0xff]
    %v92 = vld [vmem:[%s2 + $0x60] sm:$0xff]
    %v93 = vld [vmem:[%s2 + $0x68] sm:$0xff]
    %v94 = vld [vmem:[%s2 + $0x70] sm:$0xff]
    %v95 = vld [vmem:[%s2 + $0x78] sm:$0xff]
    %v96 = vld [vmem:[%s2 + $0x80] sm:$0xff]
    %v97 = vld [vmem:[%s2 + $0x88] sm:$0xff]
    %v98 = vld [vmem:[%s2 + $0x90] sm:$0xff]
    %v99 = vld [vmem:[%s2 + $0x98] sm:$0xff]
    %v100 = vld [vmem:[%s2 + $0xa0] sm:$0xff]
    %v101 = vld [vmem:[%s2 + $0xa8] sm:$0xff]
    %v102 = vld [vmem:[%s2 + $0xb0] sm:$0xff]
    %v103 = vld [vmem:[%s2 + $0xb8] sm:$0xff]
    %v104 = vld [vmem:[%s2 + $0xc0] sm:$0xff]
    %v105 = vld [vmem:[%s2 + $0xc8] sm:$0xff]
    %v106 = vld [vmem:[%s2 + $0xd0] sm:$0xff]
    %v107 = vld [vmem:[%s2 + $0xd8] sm:$0xff]
    %v108 = vld [vmem:[%s2 + $0xe0] sm:$0xff]
    %v109 = vld [vmem:[%s2 + $0xe8] sm:$0xff]
    %v110 = vld [vmem:[%s2 + $0xf0] sm:$0xff]
    %v111 = vld [vmem:[%s2 + $0xf8] sm:$0xff]
    %113 = vset.pattern.permute.xlu0 0
    %114 = vperm.xlu0 %113, %v80
    %v115 = vpop.permute.xlu0 %114
    %118 = vset.pattern.permute.xlu0 0
    %119 = vperm.xlu0 %118, %v81
    %v120 = vpop.permute.xlu0 %119
    %123 = vset.pattern.permute.xlu0 0
    %124 = vperm.xlu0 %123, %v82
    %v125 = vpop.permute.xlu0 %124
    %128 = vset.pattern.permute.xlu0 0
    %129 = vperm.xlu0 %128, %v83
    %v130 = vpop.permute.xlu0 %129
    %133 = vset.pattern.permute.xlu0 0
    %134 = vperm.xlu0 %133, %v84
    %v135 = vpop.permute.xlu0 %134
    %138 = vset.pattern.permute.xlu0 0
    %139 = vperm.xlu0 %138, %v85
    %v140 = vpop.permute.xlu0 %139
    %143 = vset.pattern.permute.xlu0 0
    %144 = vperm.xlu0 %143, %v86
    %v145 = vpop.permute.xlu0 %144
    %148 = vset.pattern.permute.xlu0 0
    %149 = vperm.xlu0 %148, %v87
    %v150 = vpop.permute.xlu0 %149
    %153 = vset.pattern.permute.xlu0 0
    %154 = vperm.xlu0 %153, %v88
    %v155 = vpop.permute.xlu0 %154
    %158 = vset.pattern.permute.xlu0 0
    %159 = vperm.xlu0 %158, %v89
    %v160 = vpop.permute.xlu0 %159
    %163 = vset.pattern.permute.xlu0 0
    %164 = vperm.xlu0 %163, %v90
    %v165 = vpop.permute.xlu0 %164
    %168 = vset.pattern.permute.xlu0 0
    %169 = vperm.xlu0 %168, %v91
    %v170 = vpop.permute.xlu0 %169
    %173 = vset.pattern.permute.xlu0 0
    %174 = vperm.xlu0 %173, %v92
    %v175 = vpop.permute.xlu0 %174
    %178 = vset.pattern.permute.xlu0 0
    %179 = vperm.xlu0 %178, %v93
    %v180 = vpop.permute.xlu0 %179
    %183 = vset.pattern.permute.xlu0 0
    %184 = vperm.xlu0 %183, %v94
    %v185 = vpop.permute.xlu0 %184
    %188 = vset.pattern.permute.xlu0 0
    %189 = vperm.xlu0 %188, %v95
    %v190 = vpop.permute.xlu0 %189
    %193 = vset.pattern.permute.xlu0 0
    %194 = vperm.xlu0 %193, %v96
    %v195 = vpop.permute.xlu0 %194
    %198 = vset.pattern.permute.xlu0 0
    %199 = vperm.xlu0 %198, %v97
    %v200 = vpop.permute.xlu0 %199
    %203 = vset.pattern.permute.xlu0 0
    %204 = vperm.xlu0 %203, %v98
    %v205 = vpop.permute.xlu0 %204
    %208 = vset.pattern.permute.xlu0 0
    %209 = vperm.xlu0 %208, %v99
    %v210 = vpop.permute.xlu0 %209
    %213 = vset.pattern.permute.xlu0 0
    %214 = vperm.xlu0 %213, %v100
    %v215 = vpop.permute.xlu0 %214
    %218 = vset.pattern.permute.xlu0 0
    %219 = vperm.xlu0 %218, %v101
    %v220 = vpop.permute.xlu0 %219
    %223 = vset.pattern.permute.xlu0 0
    %224 = vperm.xlu0 %223, %v102
    %v225 = vpop.permute.xlu0 %224
    %228 = vset.pattern.permute.xlu0 0
    %229 = vperm.xlu0 %228, %v103
    %v230 = vpop.permute.xlu0 %229
    %233 = vset.pattern.permute.xlu0 0
    %234 = vperm.xlu0 %233, %v104
    %v235 = vpop.permute.xlu0 %234
    %238 = vset.pattern.permute.xlu0 0
    %239 = vperm.xlu0 %238, %v105
    %v240 = vpop.permute.xlu0 %239
    %243 = vset.pattern.permute.xlu0 0
    %244 = vperm.xlu0 %243, %v106
    %v245 = vpop.permute.xlu0 %244
    %248 = vset.pattern.permute.xlu0 0
    %249 = vperm.xlu0 %248, %v107
    %v250 = vpop.permute.xlu0 %249
    %253 = vset.pattern.permute.xlu0 0
    %254 = vperm.xlu0 %253, %v108
    %v255 = vpop.permute.xlu0 %254
    %258 = vset.pattern.permute.xlu0 0
    %259 = vperm.xlu0 %258, %v109
    %v260 = vpop.permute.xlu0 %259
    %263 = vset.pattern.permute.xlu0 0
    %264 = vperm.xlu0 %263, %v110
    %v265 = vpop.permute.xlu0 %264
    %268 = vset.pattern.permute.xlu0 0
    %269 = vperm.xlu0 %268, %v111
    %v270 = vpop.permute.xlu0 %269
    %v304 = vunpack.c.l.b16 %v45
    %v305 = vunpack.c.l.b16 %v46
    %v306 = vunpack.c.l.b16 %v47
    %v307 = vunpack.c.l.b16 %v48
    %v308 = vunpack.c.l.b16 %v49
    %v309 = vunpack.c.l.b16 %v50
    %v310 = vunpack.c.l.b16 %v51
    %v311 = vunpack.c.l.b16 %v52
    %v312 = vunpack.c.l.b16 %v53
    %v313 = vunpack.c.l.b16 %v54
    %v314 = vunpack.c.l.b16 %v55
    %v315 = vunpack.c.l.b16 %v56
    %v316 = vunpack.c.l.b16 %v57
    %v317 = vunpack.c.l.b16 %v58
    %v318 = vunpack.c.l.b16 %v59
    %v319 = vunpack.c.l.b16 %v60
    %v320 = vunpack.c.l.b16 %v61
    %v321 = vunpack.c.l.b16 %v62
    %v322 = vunpack.c.l.b16 %v63
    %v323 = vunpack.c.l.b16 %v64
    %v324 = vunpack.c.l.b16 %v65
    %v325 = vunpack.c.l.b16 %v66
    %v326 = vunpack.c.l.b16 %v67
    %v327 = vunpack.c.l.b16 %v68
    %v328 = vunpack.c.l.b16 %v69
    %v329 = vunpack.c.l.b16 %v70
    %v330 = vunpack.c.l.b16 %v71
    %v331 = vunpack.c.l.b16 %v72
    %v332 = vunpack.c.l.b16 %v73
    %v333 = vunpack.c.l.b16 %v74
    %v334 = vunpack.c.l.b16 %v75
    %v335 = vunpack.c.l.b16 %v76
    %v336 = vpack.c.b16 %v305, %v304
    %v337 = vpack.c.b16 %v307, %v306
    %v338 = vpack.c.b16 %v309, %v308
    %v339 = vpack.c.b16 %v311, %v310
    %v340 = vpack.c.b16 %v313, %v312
    %v341 = vpack.c.b16 %v315, %v314
    %v342 = vpack.c.b16 %v317, %v316
    %v343 = vpack.c.b16 %v319, %v318
    %v344 = vpack.c.b16 %v321, %v320
    %v345 = vpack.c.b16 %v323, %v322
    %v346 = vpack.c.b16 %v325, %v324
    %v347 = vpack.c.b16 %v327, %v326
    %v348 = vpack.c.b16 %v329, %v328
    %v349 = vpack.c.b16 %v331, %v330
    %v350 = vpack.c.b16 %v333, %v332
    %v351 = vpack.c.b16 %v335, %v334
    %vm352 = vcmask 64512
    %v354 = vsel %vm352, %v336, 0
    %v357 = vsel %vm352, %v337, 0
    %v360 = vsel %vm352, %v338, 0
    %v363 = vsel %vm352, %v339, 0
    %v366 = vsel %vm352, %v340, 0
    %v369 = vsel %vm352, %v341, 0
    %v372 = vsel %vm352, %v342, 0
    %v375 = vsel %vm352, %v343, 0
    %v378 = vsel %vm352, %v344, 0
    %v381 = vsel %vm352, %v345, 0
    %v384 = vsel %vm352, %v346, 0
    %v387 = vsel %vm352, %v347, 0
    %v390 = vsel %vm352, %v348, 0
    %v393 = vsel %vm352, %v349, 0
    %v396 = vsel %vm352, %v350, 0
    %v399 = vsel %vm352, %v351, 0
    %vm401 = vcmask 1043456
    %v403 = vsel %vm401, %v77, 0
    %v406 = vsel %vm401, %v78, 0
    %v409 = vsel %vm401, %v79, 0
    %411 = vmatprep.subr.bf16.mxu0 %v406
    %412 = vmatpush1.bf16.msra.mxu0 %v403
    %413 = vmatprep.subr.bf16.mxu0 0
    %414 = vmatpush1.bf16.msra.mxu0 0
    %415 = vmatprep.subr.bf16.mxu0 0
    %416 = vmatpush1.bf16.msra.mxu0 0
    %417 = vmatprep.subr.bf16.mxu0 0
    %418 = vmatpush1.bf16.msra.mxu0 0
    %419 = vmatprep.subr.bf16.mxu0 0
    %420 = vmatpush1.bf16.msra.mxu0 0
    %421 = vmatprep.subr.bf16.mxu0 0
    %422 = vmatpush1.bf16.msra.mxu0 0
    %423 = vmatprep.subr.bf16.mxu0 0
    %424 = vmatpush1.bf16.msra.mxu0 0
    %425 = vmatprep.subr.bf16.mxu0 0
    %426 = vmatpush1.bf16.msra.mxu0 0
    %427 = vmatprep.subr.bf16.mxu0 0
    %428 = vmatpush1.bf16.msra.mxu0 0
    %429 = vmatprep.subr.bf16.mxu0 0
    %430 = vmatpush1.bf16.msra.mxu0 0
    %431 = vmatprep.subr.bf16.mxu0 0
    %432 = vmatpush1.bf16.msra.mxu0 0
    %433 = vmatprep.subr.bf16.mxu0 0
    %434 = vmatpush1.bf16.msra.mxu0 0
    %435 = vmatprep.subr.bf16.mxu0 0
    %436 = vmatpush1.bf16.msra.mxu0 0
    %437 = vmatprep.subr.bf16.mxu0 0
    %438 = vmatpush1.bf16.msra.mxu0 0
    %439 = vmatprep.subr.bf16.mxu0 0
    %440 = vmatpush1.bf16.msra.mxu0 0
    %441 = vmatprep.subr.bf16.mxu0 0
    %442 = vmatpush1.bf16.msra.mxu0 0
    %443 = vmatprep.mubr.bf16.mxu0 0
    %444 = vmatmul.mubr.bf16.gmra.mrb[0].mxu0 %v354
    %v445 = vpop.f32.mrb[0].mxu0
    %v446 = vadd.f32 %v115, %v445
    %v447 = vpop.f32.mrb[0].mxu0
    %v448 = vadd.f32 %v115, %v447
    %v449 = vpop.f32.mrb[0].mxu0
    %v450 = vadd.f32 %v120, %v449
    %v451 = vpop.f32.mrb[0].mxu0
    %v452 = vadd.f32 %v120, %v451
    %453 = vmatprep.mubr.bf16.mxu0 0
    %454 = vmatmul.mubr.bf16.gmra.mrb[0].mxu0 %v357
    %v455 = vpop.f32.mrb[0].mxu0
    %v456 = vadd.f32 %v125, %v455
    %v457 = vpop.f32.mrb[0].mxu0
    %v458 = vadd.f32 %v125, %v457
    %v459 = vpop.f32.mrb[0].mxu0
    %v460 = vadd.f32 %v130, %v459
    %v461 = vpop.f32.mrb[0].mxu0
    %v462 = vadd.f32 %v130, %v461
    %463 = vmatprep.mubr.bf16.mxu0 0
    %464 = vmatmul.mubr.bf16.gmra.mrb[0].mxu0 %v360
    %v465 = vpop.f32.mrb[0].mxu0
    %v466 = vadd.f32 %v135, %v465
    %v467 = vpop.f32.mrb[0].mxu0
    %v468 = vadd.f32 %v135, %v467
    %v469 = vpop.f32.mrb[0].mxu0
    %v470 = vadd.f32 %v140, %v469
    %v471 = vpop.f32.mrb[0].mxu0
    %v472 = vadd.f32 %v140, %v471
    %473 = vmatprep.mubr.bf16.mxu0 0
    %474 = vmatmul.mubr.bf16.gmra.mrb[0].mxu0 %v363
    %v475 = vpop.f32.mrb[0].mxu0
    %v476 = vadd.f32 %v145, %v475
    %v477 = vpop.f32.mrb[0].mxu0
    %v478 = vadd.f32 %v145, %v477
    %v479 = vpop.f32.mrb[0].mxu0
    %v480 = vadd.f32 %v150, %v479
    %v481 = vpop.f32.mrb[0].mxu0
    %v482 = vadd.f32 %v150, %v481
    %483 = vmatprep.mubr.bf16.mxu0 0
    %484 = vmatmul.mubr.bf16.gmra.mrb[0].mxu0 %v366
    %v485 = vpop.f32.mrb[0].mxu0
    %v486 = vadd.f32 %v155, %v485
    %v487 = vpop.f32.mrb[0].mxu0
    %v488 = vadd.f32 %v155, %v487
    %v489 = vpop.f32.mrb[0].mxu0
    %v490 = vadd.f32 %v160, %v489
    %v491 = vpop.f32.mrb[0].mxu0
    %v492 = vadd.f32 %v160, %v491
    %493 = vmatprep.mubr.bf16.mxu0 0
    %494 = vmatmul.mubr.bf16.gmra.mrb[0].mxu0 %v369
    %v495 = vpop.f32.mrb[0].mxu0
    %v496 = vadd.f32 %v165, %v495
    %v497 = vpop.f32.mrb[0].mxu0
    %v498 = vadd.f32 %v165, %v497
    %v499 = vpop.f32.mrb[0].mxu0
    %v500 = vadd.f32 %v170, %v499
    %v501 = vpop.f32.mrb[0].mxu0
    %v502 = vadd.f32 %v170, %v501
    %503 = vmatprep.mubr.bf16.mxu0 0
    %504 = vmatmul.mubr.bf16.gmra.mrb[0].mxu0 %v372
    %v505 = vpop.f32.mrb[0].mxu0
    %v506 = vadd.f32 %v175, %v505
    %v507 = vpop.f32.mrb[0].mxu0
    %v508 = vadd.f32 %v175, %v507
    %v509 = vpop.f32.mrb[0].mxu0
    %v510 = vadd.f32 %v180, %v509
    %v511 = vpop.f32.mrb[0].mxu0
    %v512 = vadd.f32 %v180, %v511
    %513 = vmatprep.mubr.bf16.mxu0 0
    %514 = vmatmul.mubr.bf16.gmra.mrb[0].mxu0 %v375
    %v515 = vpop.f32.mrb[0].mxu0
    %v516 = vadd.f32 %v185, %v515
    %v517 = vpop.f32.mrb[0].mxu0
    %v518 = vadd.f32 %v185, %v517
    %v519 = vpop.f32.mrb[0].mxu0
    %v520 = vadd.f32 %v190, %v519
    %v521 = vpop.f32.mrb[0].mxu0
    %v522 = vadd.f32 %v190, %v521
    %523 = vmatprep.mubr.bf16.mxu0 0
    %524 = vmatmul.mubr.bf16.gmra.mrb[0].mxu0 %v378
    %v525 = vpop.f32.mrb[0].mxu0
    %v526 = vadd.f32 %v195, %v525
    %v527 = vpop.f32.mrb[0].mxu0
    %v528 = vadd.f32 %v195, %v527
    %v529 = vpop.f32.mrb[0].mxu0
    %v530 = vadd.f32 %v200, %v529
    %v531 = vpop.f32.mrb[0].mxu0
    %v532 = vadd.f32 %v200, %v531
    %533 = vmatprep.mubr.bf16.mxu0 0
    %534 = vmatmul.mubr.bf16.gmra.mrb[0].mxu0 %v381
    %v535 = vpop.f32.mrb[0].mxu0
    %v536 = vadd.f32 %v205, %v535
    %v537 = vpop.f32.mrb[0].mxu0
    %v538 = vadd.f32 %v205, %v537
    %v539 = vpop.f32.mrb[0].mxu0
    %v540 = vadd.f32 %v210, %v539
    %v541 = vpop.f32.mrb[0].mxu0
    %v542 = vadd.f32 %v210, %v541
    %543 = vmatprep.mubr.bf16.mxu0 0
    %544 = vmatmul.mubr.bf16.gmra.mrb[0].mxu0 %v384
    %v545 = vpop.f32.mrb[0].mxu0
    %v546 = vadd.f32 %v215, %v545
    %v547 = vpop.f32.mrb[0].mxu0
    %v548 = vadd.f32 %v215, %v547
    %v549 = vpop.f32.mrb[0].mxu0
    %v550 = vadd.f32 %v220, %v549
    %v551 = vpop.f32.mrb[0].mxu0
    %v552 = vadd.f32 %v220, %v551
    %553 = vmatprep.mubr.bf16.mxu0 0
    %554 = vmatmul.mubr.bf16.gmra.mrb[0].mxu0 %v387
    %v555 = vpop.f32.mrb[0].mxu0
    %v556 = vadd.f32 %v225, %v555
    %v557 = vpop.f32.mrb[0].mxu0
    %v558 = vadd.f32 %v225, %v557
    %v559 = vpop.f32.mrb[0].mxu0
    %v560 = vadd.f32 %v230, %v559
    %v561 = vpop.f32.mrb[0].mxu0
    %v562 = vadd.f32 %v230, %v561
    %563 = vmatprep.mubr.bf16.mxu0 0
    %564 = vmatmul.mubr.bf16.gmra.mrb[0].mxu0 %v390
    %v565 = vpop.f32.mrb[0].mxu0
    %v566 = vadd.f32 %v235, %v565
    %v567 = vpop.f32.mrb[0].mxu0
    %v568 = vadd.f32 %v235, %v567
    %v569 = vpop.f32.mrb[0].mxu0
    %v570 = vadd.f32 %v240, %v569
    %v571 = vpop.f32.mrb[0].mxu0
    %v572 = vadd.f32 %v240, %v571
    %573 = vmatprep.mubr.bf16.mxu0 0
    %574 = vmatmul.mubr.bf16.gmra.mrb[0].mxu0 %v393
    %v575 = vpop.f32.mrb[0].mxu0
    %v576 = vadd.f32 %v245, %v575
    %v577 = vpop.f32.mrb[0].mxu0
    %v578 = vadd.f32 %v245, %v577
    %v579 = vpop.f32.mrb[0].mxu0
    %v580 = vadd.f32 %v250, %v579
    %v581 = vpop.f32.mrb[0].mxu0
    %v582 = vadd.f32 %v250, %v581
    %583 = vmatprep.mubr.bf16.mxu0 0
    %584 = vmatmul.mubr.bf16.gmra.mrb[0].mxu0 %v396
    %v585 = vpop.f32.mrb[0].mxu0
    %v586 = vadd.f32 %v255, %v585
    %v587 = vpop.f32.mrb[0].mxu0
    %v588 = vadd.f32 %v255, %v587
    %v589 = vpop.f32.mrb[0].mxu0
    %v590 = vadd.f32 %v260, %v589
    %v591 = vpop.f32.mrb[0].mxu0
    %v592 = vadd.f32 %v260, %v591
    %593 = vmatprep.mubr.bf16.mxu0 0
    %594 = vmatmul.mubr.bf16.gmra.mrb[0].mxu0 %v399
    %v595 = vpop.f32.mrb[0].mxu0
    %v596 = vadd.f32 %v265, %v595
    %v597 = vpop.f32.mrb[0].mxu0
    %v598 = vadd.f32 %v265, %v597
    %v599 = vpop.f32.mrb[0].mxu0
    %v600 = vadd.f32 %v270, %v599
    %v601 = vpop.f32.mrb[0].mxu0
    %v602 = vadd.f32 %v270, %v601
    %603 = vdwg.mxu0
    %604 = vmatprep.subr.bf16.mxu0 0
    %605 = vmatpush1.bf16.msra.mxu0 %v409
    %606 = vmatprep.subr.bf16.mxu0 0
    %607 = vmatpush1.bf16.msra.mxu0 0
    %608 = vmatprep.subr.bf16.mxu0 0
    %609 = vmatpush1.bf16.msra.mxu0 0
    %610 = vmatprep.subr.bf16.mxu0 0
    %611 = vmatpush1.bf16.msra.mxu0 0
    %612 = vmatprep.subr.bf16.mxu0 0
    %613 = vmatpush1.bf16.msra.mxu0 0
    %614 = vmatprep.subr.bf16.mxu0 0
    %615 = vmatpush1.bf16.msra.mxu0 0
    %616 = vmatprep.subr.bf16.mxu0 0
    %617 = vmatpush1.bf16.msra.mxu0 0
    %618 = vmatprep.subr.bf16.mxu0 0
    %619 = vmatpush1.bf16.msra.mxu0 0
    %620 = vmatprep.subr.bf16.mxu0 0
    %621 = vmatpush1.bf16.msra.mxu0 0
    %622 = vmatprep.subr.bf16.mxu0 0
    %623 = vmatpush1.bf16.msra.mxu0 0
    %624 = vmatprep.subr.bf16.mxu0 0
    %625 = vmatpush1.bf16.msra.mxu0 0
    %626 = vmatprep.subr.bf16.mxu0 0
    %627 = vmatpush1.bf16.msra.mxu0 0
    %628 = vmatprep.subr.bf16.mxu0 0
    %629 = vmatpush1.bf16.msra.mxu0 0
    %630 = vmatprep.subr.bf16.mxu0 0
    %631 = vmatpush1.bf16.msra.mxu0 0
    %632 = vmatprep.subr.bf16.mxu0 0
    %633 = vmatpush1.bf16.msra.mxu0 0
    %634 = vmatprep.subr.bf16.mxu0 0
    %635 = vmatpush1.bf16.msra.mxu0 0
    %636 = vmatprep.mubr.bf16.mxu0 0
    %637 = vmatmul.mubr.bf16.gmra.mrb[0].mxu0 %v354
    %v638 = vpop.f32.mrb[0].mxu0
    %v639 = vadd.f32 %v115, %v638
    %v640 = vpop.f32.mrb[0].mxu0
    %v641 = vpop.f32.mrb[0].mxu0
    %v642 = vadd.f32 %v120, %v641
    %v643 = vpop.f32.mrb[0].mxu0
    %644 = vmatprep.mubr.bf16.mxu0 0
    %645 = vmatmul.mubr.bf16.gmra.mrb[0].mxu0 %v357
    %v646 = vpop.f32.mrb[0].mxu0
    %v647 = vadd.f32 %v125, %v646
    %v648 = vpop.f32.mrb[0].mxu0
    %v649 = vpop.f32.mrb[0].mxu0
    %v650 = vadd.f32 %v130, %v649
    %v651 = vpop.f32.mrb[0].mxu0
    %652 = vmatprep.mubr.bf16.mxu0 0
    %653 = vmatmul.mubr.bf16.gmra.mrb[0].mxu0 %v360
    %v654 = vpop.f32.mrb[0].mxu0
    %v655 = vadd.f32 %v135, %v654
    %v656 = vpop.f32.mrb[0].mxu0
    %v657 = vpop.f32.mrb[0].mxu0
    %v658 = vadd.f32 %v140, %v657
    %v659 = vpop.f32.mrb[0].mxu0
    %660 = vmatprep.mubr.bf16.mxu0 0
    %661 = vmatmul.mubr.bf16.gmra.mrb[0].mxu0 %v363
    %v662 = vpop.f32.mrb[0].mxu0
    %v663 = vadd.f32 %v145, %v662
    %v664 = vpop.f32.mrb[0].mxu0
    %v665 = vpop.f32.mrb[0].mxu0
    %v666 = vadd.f32 %v150, %v665
    %v667 = vpop.f32.mrb[0].mxu0
    %668 = vmatprep.mubr.bf16.mxu0 0
    %669 = vmatmul.mubr.bf16.gmra.mrb[0].mxu0 %v366
    %v670 = vpop.f32.mrb[0].mxu0
    %v671 = vadd.f32 %v155, %v670
    %v672 = vpop.f32.mrb[0].mxu0
    %v673 = vpop.f32.mrb[0].mxu0
    %v674 = vadd.f32 %v160, %v673
    %v675 = vpop.f32.mrb[0].mxu0
    %676 = vmatprep.mubr.bf16.mxu0 0
    %677 = vmatmul.mubr.bf16.gmra.mrb[0].mxu0 %v369
    %v678 = vpop.f32.mrb[0].mxu0
    %v679 = vadd.f32 %v165, %v678
    %v680 = vpop.f32.mrb[0].mxu0
    %v681 = vpop.f32.mrb[0].mxu0
    %v682 = vadd.f32 %v170, %v681
    %v683 = vpop.f32.mrb[0].mxu0
    %684 = vmatprep.mubr.bf16.mxu0 0
    %685 = vmatmul.mubr.bf16.gmra.mrb[0].mxu0 %v372
    %v686 = vpop.f32.mrb[0].mxu0
    %v687 = vadd.f32 %v175, %v686
    %v688 = vpop.f32.mrb[0].mxu0
    %v689 = vpop.f32.mrb[0].mxu0
    %v690 = vadd.f32 %v180, %v689
    %v691 = vpop.f32.mrb[0].mxu0
    %692 = vmatprep.mubr.bf16.mxu0 0
    %693 = vmatmul.mubr.bf16.gmra.mrb[0].mxu0 %v375
    %v694 = vpop.f32.mrb[0].mxu0
    %v695 = vadd.f32 %v185, %v694
    %v696 = vpop.f32.mrb[0].mxu0
    %v697 = vpop.f32.mrb[0].mxu0
    %v698 = vadd.f32 %v190, %v697
    %v699 = vpop.f32.mrb[0].mxu0
    %700 = vmatprep.mubr.bf16.mxu0 0
    %701 = vmatmul.mubr.bf16.gmra.mrb[0].mxu0 %v378
    %v702 = vpop.f32.mrb[0].mxu0
    %v703 = vadd.f32 %v195, %v702
    %v704 = vpop.f32.mrb[0].mxu0
    %v705 = vpop.f32.mrb[0].mxu0
    %v706 = vadd.f32 %v200, %v705
    %v707 = vpop.f32.mrb[0].mxu0
    %708 = vmatprep.mubr.bf16.mxu0 0
    %709 = vmatmul.mubr.bf16.gmra.mrb[0].mxu0 %v381
    %v710 = vpop.f32.mrb[0].mxu0
    %v711 = vadd.f32 %v205, %v710
    %v712 = vpop.f32.mrb[0].mxu0
    %v713 = vpop.f32.mrb[0].mxu0
    %v714 = vadd.f32 %v210, %v713
    %v715 = vpop.f32.mrb[0].mxu0
    %716 = vmatprep.mubr.bf16.mxu0 0
    %717 = vmatmul.mubr.bf16.gmra.mrb[0].mxu0 %v384
    %v718 = vpop.f32.mrb[0].mxu0
    %v719 = vadd.f32 %v215, %v718
    %v720 = vpop.f32.mrb[0].mxu0
    %v721 = vpop.f32.mrb[0].mxu0
    %v722 = vadd.f32 %v220, %v721
    %v723 = vpop.f32.mrb[0].mxu0
    %724 = vmatprep.mubr.bf16.mxu0 0
    %725 = vmatmul.mubr.bf16.gmra.mrb[0].mxu0 %v387
    %v726 = vpop.f32.mrb[0].mxu0
    %v727 = vadd.f32 %v225, %v726
    %v728 = vpop.f32.mrb[0].mxu0
    %v729 = vpop.f32.mrb[0].mxu0
    %v730 = vadd.f32 %v230, %v729
    %v731 = vpop.f32.mrb[0].mxu0
    %732 = vmatprep.mubr.bf16.mxu0 0
    %733 = vmatmul.mubr.bf16.gmra.mrb[0].mxu0 %v390
    %v734 = vpop.f32.mrb[0].mxu0
    %v735 = vadd.f32 %v235, %v734
    %v736 = vpop.f32.mrb[0].mxu0
    %v737 = vpop.f32.mrb[0].mxu0
    %v738 = vadd.f32 %v240, %v737
    %v739 = vpop.f32.mrb[0].mxu0
    %740 = vmatprep.mubr.bf16.mxu0 0
    %741 = vmatmul.mubr.bf16.gmra.mrb[0].mxu0 %v393
    %v742 = vpop.f32.mrb[0].mxu0
    %v743 = vadd.f32 %v245, %v742
    %v744 = vpop.f32.mrb[0].mxu0
    %v745 = vpop.f32.mrb[0].mxu0
    %v746 = vadd.f32 %v250, %v745
    %v747 = vpop.f32.mrb[0].mxu0
    %748 = vmatprep.mubr.bf16.mxu0 0
    %749 = vmatmul.mubr.bf16.gmra.mrb[0].mxu0 %v396
    %v750 = vpop.f32.mrb[0].mxu0
    %v751 = vadd.f32 %v255, %v750
    %v752 = vpop.f32.mrb[0].mxu0
    %v753 = vpop.f32.mrb[0].mxu0
    %v754 = vadd.f32 %v260, %v753
    %v755 = vpop.f32.mrb[0].mxu0
    %756 = vmatprep.mubr.bf16.mxu0 0
    %757 = vmatmul.mubr.bf16.gmra.mrb[0].mxu0 %v399
    %v758 = vpop.f32.mrb[0].mxu0
    %v759 = vadd.f32 %v265, %v758
    %v760 = vpop.f32.mrb[0].mxu0
    %v761 = vpop.f32.mrb[0].mxu0
    %v762 = vadd.f32 %v270, %v761
    %v763 = vpop.f32.mrb[0].mxu0
    %764 = vdwg.mxu0
    %v765 = vmax.f32 %v446, 0.0
    %v766 = vmax.f32 %v448, 0.0
    %v767 = vmax.f32 %v639, 0.0
    %v768 = vmax.f32 %v450, 0.0
    %v769 = vmax.f32 %v452, 0.0
    %v770 = vmax.f32 %v642, 0.0
    %v771 = vmax.f32 %v456, 0.0
    %v772 = vmax.f32 %v458, 0.0
    %v773 = vmax.f32 %v647, 0.0
    %v774 = vmax.f32 %v460, 0.0
    %v775 = vmax.f32 %v462, 0.0
    %v776 = vmax.f32 %v650, 0.0
    %v777 = vmax.f32 %v466, 0.0
    %v778 = vmax.f32 %v468, 0.0
    %v779 = vmax.f32 %v655, 0.0
    %v780 = vmax.f32 %v470, 0.0
    %v781 = vmax.f32 %v472, 0.0
    %v782 = vmax.f32 %v658, 0.0
    %v783 = vmax.f32 %v476, 0.0
    %v784 = vmax.f32 %v478, 0.0
    %v785 = vmax.f32 %v663, 0.0
    %v786 = vmax.f32 %v480, 0.0
    %v787 = vmax.f32 %v482, 0.0
    %v788 = vmax.f32 %v666, 0.0
    %v789 = vmax.f32 %v486, 0.0
    %v790 = vmax.f32 %v488, 0.0
    %v791 = vmax.f32 %v671, 0.0
    %v792 = vmax.f32 %v490, 0.0
    %v793 = vmax.f32 %v492, 0.0
    %v794 = vmax.f32 %v674, 0.0
    %v795 = vmax.f32 %v496, 0.0
    %v796 = vmax.f32 %v498, 0.0
    %v797 = vmax.f32 %v679, 0.0
    %v798 = vmax.f32 %v500, 0.0
    %v799 = vmax.f32 %v502, 0.0
    %v800 = vmax.f32 %v682, 0.0
    %v801 = vmax.f32 %v506, 0.0
    %v802 = vmax.f32 %v508, 0.0
    %v803 = vmax.f32 %v687, 0.0
    %v804 = vmax.f32 %v510, 0.0
    %v805 = vmax.f32 %v512, 0.0
    %v806 = vmax.f32 %v690, 0.0
    %v807 = vmax.f32 %v516, 0.0
    %v808 = vmax.f32 %v518, 0.0
    %v809 = vmax.f32 %v695, 0.0
    %v810 = vmax.f32 %v520, 0.0
    %v811 = vmax.f32 %v522, 0.0
    %v812 = vmax.f32 %v698, 0.0
    %v813 = vmax.f32 %v526, 0.0
    %v814 = vmax.f32 %v528, 0.0
    %v815 = vmax.f32 %v703, 0.0
    %v816 = vmax.f32 %v530, 0.0
    %v817 = vmax.f32 %v532, 0.0
    %v818 = vmax.f32 %v706, 0.0
    %v819 = vmax.f32 %v536, 0.0
    %v820 = vmax.f32 %v538, 0.0
    %v821 = vmax.f32 %v711, 0.0
    %v822 = vmax.f32 %v540, 0.0
    %v823 = vmax.f32 %v542, 0.0
    %v824 = vmax.f32 %v714, 0.0
    %v825 = vmax.f32 %v546, 0.0
    %v826 = vmax.f32 %v548, 0.0
    %v827 = vmax.f32 %v719, 0.0
    %v828 = vmax.f32 %v550, 0.0
    %v829 = vmax.f32 %v552, 0.0
    %v830 = vmax.f32 %v722, 0.0
    %v831 = vmax.f32 %v556, 0.0
    %v832 = vmax.f32 %v558, 0.0
    %v833 = vmax.f32 %v727, 0.0
    %v834 = vmax.f32 %v560, 0.0
    %v835 = vmax.f32 %v562, 0.0
    %v836 = vmax.f32 %v730, 0.0
    %v837 = vmax.f32 %v566, 0.0
    %v838 = vmax.f32 %v568, 0.0
    %v839 = vmax.f32 %v735, 0.0
    %v840 = vmax.f32 %v570, 0.0
    %v841 = vmax.f32 %v572, 0.0
    %v842 = vmax.f32 %v738, 0.0
    %v843 = vmax.f32 %v576, 0.0
    %v844 = vmax.f32 %v578, 0.0
    %v845 = vmax.f32 %v743, 0.0
    %v846 = vmax.f32 %v580, 0.0
    %v847 = vmax.f32 %v582, 0.0
    %v848 = vmax.f32 %v746, 0.0
    %v849 = vmax.f32 %v586, 0.0
    %v850 = vmax.f32 %v588, 0.0
    %v851 = vmax.f32 %v751, 0.0
    %v852 = vmax.f32 %v590, 0.0
    %v853 = vmax.f32 %v592, 0.0
    %v854 = vmax.f32 %v754, 0.0
    %v855 = vmax.f32 %v596, 0.0
    %v856 = vmax.f32 %v598, 0.0
    %v857 = vmax.f32 %v759, 0.0
    %v858 = vmax.f32 %v600, 0.0
    %v859 = vmax.f32 %v602, 0.0
    %v860 = vmax.f32 %v762, 0.0
    %v861 = vld [vmem:[%s3] sm:$0xff]
    %v862 = vld [vmem:[%s3 + $0x8] sm:$0xff]
    %v863 = vld [vmem:[%s3 + $0x10] sm:$0xff]
    %v864 = vld [vmem:[%s3 + $0x18] sm:$0xff]
    %v865 = vld [vmem:[%s3 + $0x20] sm:$0xff]
    %v866 = vld [vmem:[%s3 + $0x28] sm:$0xff]
    %v867 = vld [vmem:[%s3 + $0x30] sm:$0xff]
    %v868 = vld [vmem:[%s3 + $0x38] sm:$0xff]
    %v869 = vpack.c.bf16 %v768, %v765
    %v870 = vpack.c.bf16 %v769, %v766
    %v871 = vpack.c.bf16 %v770, %v767
    %v872 = vpack.c.bf16 %v774, %v771
    %v873 = vpack.c.bf16 %v775, %v772
    %v874 = vpack.c.bf16 %v776, %v773
    %v875 = vpack.c.bf16 %v780, %v777
    %v876 = vpack.c.bf16 %v781, %v778
    %v877 = vpack.c.bf16 %v782, %v779
    %v878 = vpack.c.bf16 %v786, %v783
    %v879 = vpack.c.bf16 %v787, %v784
    %v880 = vpack.c.bf16 %v788, %v785
    %v881 = vpack.c.bf16 %v792, %v789
    %v882 = vpack.c.bf16 %v793, %v790
    %v883 = vpack.c.bf16 %v794, %v791
    %v884 = vpack.c.bf16 %v798, %v795
    %v885 = vpack.c.bf16 %v799, %v796
    %v886 = vpack.c.bf16 %v800, %v797
    %v887 = vpack.c.bf16 %v804, %v801
    %v888 = vpack.c.bf16 %v805, %v802
    %v889 = vpack.c.bf16 %v806, %v803
    %v890 = vpack.c.bf16 %v810, %v807
    %v891 = vpack.c.bf16 %v811, %v808
    %v892 = vpack.c.bf16 %v812, %v809
    %v893 = vpack.c.bf16 %v816, %v813
    %v894 = vpack.c.bf16 %v817, %v814
    %v895 = vpack.c.bf16 %v818, %v815
    %v896 = vpack.c.bf16 %v822, %v819
    %v897 = vpack.c.bf16 %v823, %v820
    %v898 = vpack.c.bf16 %v824, %v821
    %v899 = vpack.c.bf16 %v828, %v825
    %v900 = vpack.c.bf16 %v829, %v826
    %v901 = vpack.c.bf16 %v830, %v827
    %v902 = vpack.c.bf16 %v834, %v831
    %v903 = vpack.c.bf16 %v835, %v832
    %v904 = vpack.c.bf16 %v836, %v833
    %v905 = vpack.c.bf16 %v840, %v837
    %v906 = vpack.c.bf16 %v841, %v838
    %v907 = vpack.c.bf16 %v842, %v839
    %v908 = vpack.c.bf16 %v846, %v843
    %v909 = vpack.c.bf16 %v847, %v844
    %v910 = vpack.c.bf16 %v848, %v845
    %v911 = vpack.c.bf16 %v852, %v849
    %v912 = vpack.c.bf16 %v853, %v850
    %v913 = vpack.c.bf16 %v854, %v851
    %v914 = vpack.c.bf16 %v858, %v855
    %v915 = vpack.c.bf16 %v859, %v856
    %v916 = vpack.c.bf16 %v860, %v857
    %v917 = vld [vmem:[%s4] sm:$0xff]
    %v918 = vld [vmem:[%s4 + $0x8] sm:$0xff]
    %v919 = vld [vmem:[%s4 + $0x10] sm:$0xff]
    %v920 = vld [vmem:[%s4 + $0x18] sm:$0xff]
    %v921 = vld [vmem:[%s4 + $0x20] sm:$0xff]
    %v922 = vld [vmem:[%s4 + $0x28] sm:$0xff]
    %v923 = vld [vmem:[%s4 + $0x30] sm:$0xff]
    %v924 = vld [vmem:[%s4 + $0x38] sm:$0xff]
    %926 = vset.pattern.permute.xlu0 0
    %927 = vperm.xlu0 %926, %v917
    %v928 = vpop.permute.xlu0 %927
    %931 = vset.pattern.permute.xlu0 0
    %932 = vperm.xlu0 %931, %v918
    %v933 = vpop.permute.xlu0 %932
    %936 = vset.pattern.permute.xlu0 0
    %937 = vperm.xlu0 %936, %v919
    %v938 = vpop.permute.xlu0 %937
    %941 = vset.pattern.permute.xlu0 0
    %942 = vperm.xlu0 %941, %v920
    %v943 = vpop.permute.xlu0 %942
    %946 = vset.pattern.permute.xlu0 0
    %947 = vperm.xlu0 %946, %v921
    %v948 = vpop.permute.xlu0 %947
    %951 = vset.pattern.permute.xlu0 0
    %952 = vperm.xlu0 %951, %v922
    %v953 = vpop.permute.xlu0 %952
    %956 = vset.pattern.permute.xlu0 0
    %957 = vperm.xlu0 %956, %v923
    %v958 = vpop.permute.xlu0 %957
    %961 = vset.pattern.permute.xlu0 0
    %962 = vperm.xlu0 %961, %v924
    %v963 = vpop.permute.xlu0 %962
    %v973 = vunpack.c.l.b16 %v861
    %v974 = vunpack.c.h.b16 %v861
    %v975 = vunpack.c.l.b16 %v862
    %v976 = vunpack.c.h.b16 %v862
    %v977 = vunpack.c.l.b16 %v863
    %v978 = vunpack.c.h.b16 %v863
    %v979 = vunpack.c.l.b16 %v864
    %v980 = vunpack.c.h.b16 %v864
    %v981 = vunpack.c.l.b16 %v865
    %v982 = vunpack.c.h.b16 %v865
    %v983 = vunpack.c.l.b16 %v866
    %v984 = vunpack.c.h.b16 %v866
    %v985 = vunpack.c.l.b16 %v867
    %v986 = vunpack.c.h.b16 %v867
    %v987 = vunpack.c.l.b16 %v868
    %v988 = vunpack.c.h.b16 %v868
    %v989 = vpack.c.b16 %v975, %v973
    %v990 = vpack.c.b16 %v976, %v974
    %v991 = vpack.c.b16 %v979, %v977
    %v992 = vpack.c.b16 %v980, %v978
    %v993 = vpack.c.b16 %v983, %v981
    %v994 = vpack.c.b16 %v984, %v982
    %v995 = vpack.c.b16 %v987, %v985
    %v996 = vpack.c.b16 %v988, %v986
    %1005 = vmatprep.subr.bf16.mxu0 %v870
    %1006 = vmatpush1.bf16.msra.mxu0 %v869
    %1007 = vmatprep.subr.bf16.mxu0 %v873
    %1008 = vmatpush1.bf16.msra.mxu0 %v872
    %1009 = vmatprep.subr.bf16.mxu0 %v876
    %1010 = vmatpush1.bf16.msra.mxu0 %v875
    %1011 = vmatprep.subr.bf16.mxu0 %v879
    %1012 = vmatpush1.bf16.msra.mxu0 %v878
    %1013 = vmatprep.subr.bf16.mxu0 %v882
    %1014 = vmatpush1.bf16.msra.mxu0 %v881
    %1015 = vmatprep.subr.bf16.mxu0 %v885
    %1016 = vmatpush1.bf16.msra.mxu0 %v884
    %1017 = vmatprep.subr.bf16.mxu0 %v888
    %1018 = vmatpush1.bf16.msra.mxu0 %v887
    %1019 = vmatprep.subr.bf16.mxu0 %v891
    %1020 = vmatpush1.bf16.msra.mxu0 %v890
    %1021 = vmatprep.subr.bf16.mxu0 %v894
    %1022 = vmatpush1.bf16.msra.mxu0 %v893
    %1023 = vmatprep.subr.bf16.mxu0 %v897
    %1024 = vmatpush1.bf16.msra.mxu0 %v896
    %1025 = vmatprep.subr.bf16.mxu0 %v900
    %1026 = vmatpush1.bf16.msra.mxu0 %v899
    %1027 = vmatprep.subr.bf16.mxu0 %v903
    %1028 = vmatpush1.bf16.msra.mxu0 %v902
    %1029 = vmatprep.subr.bf16.mxu0 %v906
    %1030 = vmatpush1.bf16.msra.mxu0 %v905
    %1031 = vmatprep.subr.bf16.mxu0 %v909
    %1032 = vmatpush1.bf16.msra.mxu0 %v908
    %1033 = vmatprep.subr.bf16.mxu0 %v912
    %1034 = vmatpush1.bf16.msra.mxu0 %v911
    %1035 = vmatprep.subr.bf16.mxu0 %v915
    %1036 = vmatpush1.bf16.msra.mxu0 %v914
    %1037 = vmatprep.mubr.bf16.mxu0 %v990
    %1038 = vmatmul.mubr.bf16.gmra.mrb[0].mxu0 %v989
    %v1039 = vpop.f32.mrb[0].mxu0
    %v1040 = vadd.f32 %v928, %v1039
    %v1041 = vpop.f32.mrb[0].mxu0
    %v1042 = vadd.f32 %v928, %v1041
    %v1043 = vpop.f32.mrb[0].mxu0
    %v1044 = vadd.f32 %v933, %v1043
    %v1045 = vpop.f32.mrb[0].mxu0
    %v1046 = vadd.f32 %v933, %v1045
    %1047 = vmatprep.mubr.bf16.mxu0 %v992
    %1048 = vmatmul.mubr.bf16.gmra.mrb[0].mxu0 %v991
    %v1049 = vpop.f32.mrb[0].mxu0
    %v1050 = vadd.f32 %v938, %v1049
    %v1051 = vpop.f32.mrb[0].mxu0
    %v1052 = vadd.f32 %v938, %v1051
    %v1053 = vpop.f32.mrb[0].mxu0
    %v1054 = vadd.f32 %v943, %v1053
    %v1055 = vpop.f32.mrb[0].mxu0
    %v1056 = vadd.f32 %v943, %v1055
    %1057 = vmatprep.mubr.bf16.mxu0 %v994
    %1058 = vmatmul.mubr.bf16.gmra.mrb[0].mxu0 %v993
    %v1059 = vpop.f32.mrb[0].mxu0
    %v1060 = vadd.f32 %v948, %v1059
    %v1061 = vpop.f32.mrb[0].mxu0
    %v1062 = vadd.f32 %v948, %v1061
    %v1063 = vpop.f32.mrb[0].mxu0
    %v1064 = vadd.f32 %v953, %v1063
    %v1065 = vpop.f32.mrb[0].mxu0
    %v1066 = vadd.f32 %v953, %v1065
    %1067 = vmatprep.mubr.bf16.mxu0 %v996
    %1068 = vmatmul.mubr.bf16.gmra.mrb[0].mxu0 %v995
    %v1069 = vpop.f32.mrb[0].mxu0
    %v1070 = vadd.f32 %v958, %v1069
    %v1071 = vpop.f32.mrb[0].mxu0
    %v1072 = vadd.f32 %v958, %v1071
    %v1073 = vpop.f32.mrb[0].mxu0
    %v1074 = vadd.f32 %v963, %v1073
    %v1075 = vpop.f32.mrb[0].mxu0
    %v1076 = vadd.f32 %v963, %v1075
    %1077 = vdwg.mxu0
    %1078 = vmatprep.subr.bf16.mxu0 0
    %1079 = vmatpush1.bf16.msra.mxu0 %v871
    %1080 = vmatprep.subr.bf16.mxu0 0
    %1081 = vmatpush1.bf16.msra.mxu0 %v874
    %1082 = vmatprep.subr.bf16.mxu0 0
    %1083 = vmatpush1.bf16.msra.mxu0 %v877
    %1084 = vmatprep.subr.bf16.mxu0 0
    %1085 = vmatpush1.bf16.msra.mxu0 %v880
    %1086 = vmatprep.subr.bf16.mxu0 0
    %1087 = vmatpush1.bf16.msra.mxu0 %v883
    %1088 = vmatprep.subr.bf16.mxu0 0
    %1089 = vmatpush1.bf16.msra.mxu0 %v886
    %1090 = vmatprep.subr.bf16.mxu0 0
    %1091 = vmatpush1.bf16.msra.mxu0 %v889
    %1092 = vmatprep.subr.bf16.mxu0 0
    %1093 = vmatpush1.bf16.msra.mxu0 %v892
    %1094 = vmatprep.subr.bf16.mxu0 0
    %1095 = vmatpush1.bf16.msra.mxu0 %v895
    %1096 = vmatprep.subr.bf16.mxu0 0
    %1097 = vmatpush1.bf16.msra.mxu0 %v898
    %1098 = vmatprep.subr.bf16.mxu0 0
    %1099 = vmatpush1.bf16.msra.mxu0 %v901
    %1100 = vmatprep.subr.bf16.mxu0 0
    %1101 = vmatpush1.bf16.msra.mxu0 %v904
    %1102 = vmatprep.subr.bf16.mxu0 0
    %1103 = vmatpush1.bf16.msra.mxu0 %v907
    %1104 = vmatprep.subr.bf16.mxu0 0
    %1105 = vmatpush1.bf16.msra.mxu0 %v910
    %1106 = vmatprep.subr.bf16.mxu0 0
    %1107 = vmatpush1.bf16.msra.mxu0 %v913
    %1108 = vmatprep.subr.bf16.mxu0 0
    %1109 = vmatpush1.bf16.msra.mxu0 %v916
    %1110 = vmatprep.mubr.bf16.mxu0 %v990
    %1111 = vmatmul.mubr.bf16.gmra.mrb[0].mxu0 %v989
    %v1112 = vpop.f32.mrb[0].mxu0
    %v1113 = vadd.f32 %v928, %v1112
    %v1114 = vpop.f32.mrb[0].mxu0
    %v1115 = vpop.f32.mrb[0].mxu0
    %v1116 = vadd.f32 %v933, %v1115
    %v1117 = vpop.f32.mrb[0].mxu0
    %1118 = vmatprep.mubr.bf16.mxu0 %v992
    %1119 = vmatmul.mubr.bf16.gmra.mrb[0].mxu0 %v991
    %v1120 = vpop.f32.mrb[0].mxu0
    %v1121 = vadd.f32 %v938, %v1120
    %v1122 = vpop.f32.mrb[0].mxu0
    %v1123 = vpop.f32.mrb[0].mxu0
    %v1124 = vadd.f32 %v943, %v1123
    %v1125 = vpop.f32.mrb[0].mxu0
    %1126 = vmatprep.mubr.bf16.mxu0 %v994
    %1127 = vmatmul.mubr.bf16.gmra.mrb[0].mxu0 %v993
    %v1128 = vpop.f32.mrb[0].mxu0
    %v1129 = vadd.f32 %v948, %v1128
    %v1130 = vpop.f32.mrb[0].mxu0
    %v1131 = vpop.f32.mrb[0].mxu0
    %v1132 = vadd.f32 %v953, %v1131
    %v1133 = vpop.f32.mrb[0].mxu0
    %1134 = vmatprep.mubr.bf16.mxu0 %v996
    %1135 = vmatmul.mubr.bf16.gmra.mrb[0].mxu0 %v995
    %v1136 = vpop.f32.mrb[0].mxu0
    %v1137 = vadd.f32 %v958, %v1136
    %v1138 = vpop.f32.mrb[0].mxu0
    %v1139 = vpop.f32.mrb[0].mxu0
    %v1140 = vadd.f32 %v963, %v1139
    %v1141 = vpop.f32.mrb[0].mxu0
    %1142 = vdwg.mxu0
    %v1143 = vmax.f32 %v1040, 0.0
    %v1144 = vmax.f32 %v1042, 0.0
    %v1145 = vmax.f32 %v1113, 0.0
    %v1146 = vmax.f32 %v1044, 0.0
    %v1147 = vmax.f32 %v1046, 0.0
    %v1148 = vmax.f32 %v1116, 0.0
    %v1149 = vmax.f32 %v1050, 0.0
    %v1150 = vmax.f32 %v1052, 0.0
    %v1151 = vmax.f32 %v1121, 0.0
    %v1152 = vmax.f32 %v1054, 0.0
    %v1153 = vmax.f32 %v1056, 0.0
    %v1154 = vmax.f32 %v1124, 0.0
    %v1155 = vmax.f32 %v1060, 0.0
    %v1156 = vmax.f32 %v1062, 0.0
    %v1157 = vmax.f32 %v1129, 0.0
    %v1158 = vmax.f32 %v1064, 0.0
    %v1159 = vmax.f32 %v1066, 0.0
    %v1160 = vmax.f32 %v1132, 0.0
    %v1161 = vmax.f32 %v1070, 0.0
    %v1162 = vmax.f32 %v1072, 0.0
    %v1163 = vmax.f32 %v1137, 0.0
    %v1164 = vmax.f32 %v1074, 0.0
    %v1165 = vmax.f32 %v1076, 0.0
    %v1166 = vmax.f32 %v1140, 0.0
    %v1167 = vld [vmem:[%s5] sm:$0xf]
    %v1168 = vld [vmem:[%s5 + $0x4] sm:$0xf]
    %v1169 = vpack.c.bf16 %v1146, %v1143
    %v1170 = vpack.c.bf16 %v1147, %v1144
    %v1171 = vpack.c.bf16 %v1148, %v1145
    %v1172 = vpack.c.bf16 %v1152, %v1149
    %v1173 = vpack.c.bf16 %v1153, %v1150
    %v1174 = vpack.c.bf16 %v1154, %v1151
    %v1175 = vpack.c.bf16 %v1158, %v1155
    %v1176 = vpack.c.bf16 %v1159, %v1156
    %v1177 = vpack.c.bf16 %v1160, %v1157
    %v1178 = vpack.c.bf16 %v1164, %v1161
    %v1179 = vpack.c.bf16 %v1165, %v1162
    %v1180 = vpack.c.bf16 %v1166, %v1163
    %v1181 = vld [vmem:[%s6] sm:$0xff]
    %v1182 = vld [vmem:[%s6 + $0x8] sm:$0xff]
    %1184 = vset.pattern.permute.xlu0 0
    %1185 = vperm.xlu0 %1184, %v1181
    %v1186 = vpop.permute.xlu0 %1185
    %1189 = vset.pattern.permute.xlu0 0
    %1190 = vperm.xlu0 %1189, %v1182
    %v1191 = vpop.permute.xlu0 %1190
    %v1195 = vunpack.c.l.b16 %v1167
    %v1196 = vunpack.c.l.b16 %v1168
    %v1197 = vpack.c.b16 %v1196, %v1195
    %vm1198 = vcmask 523264
    %v1200 = vsel %vm1198, %v1197, 0
    %1202 = vmatprep.subr.bf16.mxu0 %v1170
    %1203 = vmatpush1.bf16.msra.mxu0 %v1169
    %1204 = vmatprep.subr.bf16.mxu0 %v1173
    %1205 = vmatpush1.bf16.msra.mxu0 %v1172
    %1206 = vmatprep.subr.bf16.mxu0 %v1176
    %1207 = vmatpush1.bf16.msra.mxu0 %v1175
    %1208 = vmatprep.subr.bf16.mxu0 %v1179
    %1209 = vmatpush1.bf16.msra.mxu0 %v1178
    %1210 = vmatprep.subr.bf16.mxu0 0
    %1211 = vmatpush1.bf16.msra.mxu0 0
    %1212 = vmatprep.subr.bf16.mxu0 0
    %1213 = vmatpush1.bf16.msra.mxu0 0
    %1214 = vmatprep.subr.bf16.mxu0 0
    %1215 = vmatpush1.bf16.msra.mxu0 0
    %1216 = vmatprep.subr.bf16.mxu0 0
    %1217 = vmatpush1.bf16.msra.mxu0 0
    %1218 = vmatprep.subr.bf16.mxu0 0
    %1219 = vmatpush1.bf16.msra.mxu0 0
    %1220 = vmatprep.subr.bf16.mxu0 0
    %1221 = vmatpush1.bf16.msra.mxu0 0
    %1222 = vmatprep.subr.bf16.mxu0 0
    %1223 = vmatpush1.bf16.msra.mxu0 0
    %1224 = vmatprep.subr.bf16.mxu0 0
    %1225 = vmatpush1.bf16.msra.mxu0 0
    %1226 = vmatprep.subr.bf16.mxu0 0
    %1227 = vmatpush1.bf16.msra.mxu0 0
    %1228 = vmatprep.subr.bf16.mxu0 0
    %1229 = vmatpush1.bf16.msra.mxu0 0
    %1230 = vmatprep.subr.bf16.mxu0 0
    %1231 = vmatpush1.bf16.msra.mxu0 0
    %1232 = vmatprep.subr.bf16.mxu0 0
    %1233 = vmatpush1.bf16.msra.mxu0 0
    %1234 = vmatprep.mubr.bf16.mxu0 0
    %1235 = vmatmul.mubr.bf16.gmra.mrb[0].mxu0 %v1200
    %v1236 = vpop.f32.mrb[0].mxu0
    %v1237 = vadd.f32 %v1186, %v1236
    %v1238 = vpop.f32.mrb[0].mxu0
    %v1239 = vadd.f32 %v1186, %v1238
    %v1240 = vpop.f32.mrb[0].mxu0
    %v1241 = vadd.f32 %v1191, %v1240
    %v1242 = vpop.f32.mrb[0].mxu0
    %v1243 = vadd.f32 %v1191, %v1242
    %1244 = vdwg.mxu0
    %1245 = vmatprep.subr.bf16.mxu0 0
    %1246 = vmatpush1.bf16.msra.mxu0 %v1171
    %1247 = vmatprep.subr.bf16.mxu0 0
    %1248 = vmatpush1.bf16.msra.mxu0 %v1174
    %1249 = vmatprep.subr.bf16.mxu0 0
    %1250 = vmatpush1.bf16.msra.mxu0 %v1177
    %1251 = vmatprep.subr.bf16.mxu0 0
    %1252 = vmatpush1.bf16.msra.mxu0 %v1180
    %1253 = vmatprep.subr.bf16.mxu0 0
    %1254 = vmatpush1.bf16.msra.mxu0 0
    %1255 = vmatprep.subr.bf16.mxu0 0
    %1256 = vmatpush1.bf16.msra.mxu0 0
    %1257 = vmatprep.subr.bf16.mxu0 0
    %1258 = vmatpush1.bf16.msra.mxu0 0
    %1259 = vmatprep.subr.bf16.mxu0 0
    %1260 = vmatpush1.bf16.msra.mxu0 0
    %1261 = vmatprep.subr.bf16.mxu0 0
    %1262 = vmatpush1.bf16.msra.mxu0 0
    %1263 = vmatprep.subr.bf16.mxu0 0
    %1264 = vmatpush1.bf16.msra.mxu0 0
    %1265 = vmatprep.subr.bf16.mxu0 0
    %1266 = vmatpush1.bf16.msra.mxu0 0
    %1267 = vmatprep.subr.bf16.mxu0 0
    %1268 = vmatpush1.bf16.msra.mxu0 0
    %1269 = vmatprep.subr.bf16.mxu0 0
    %1270 = vmatpush1.bf16.msra.mxu0 0
    %1271 = vmatprep.subr.bf16.mxu0 0
    %1272 = vmatpush1.bf16.msra.mxu0 0
    %1273 = vmatprep.subr.bf16.mxu0 0
    %1274 = vmatpush1.bf16.msra.mxu0 0
    %1275 = vmatprep.subr.bf16.mxu0 0
    %1276 = vmatpush1.bf16.msra.mxu0 0
    %1277 = vmatprep.mubr.bf16.mxu0 0
    %1278 = vmatmul.mubr.bf16.gmra.mrb[0].mxu0 %v1200
    %v1279 = vpop.f32.mrb[0].mxu0
    %v1280 = vadd.f32 %v1186, %v1279
    %v1281 = vpop.f32.mrb[0].mxu0
    %v1282 = vpop.f32.mrb[0].mxu0
    %v1283 = vadd.f32 %v1191, %v1282
    %v1284 = vpop.f32.mrb[0].mxu0
    %1285 = vdwg.mxu0
    %v1286 = vmax.f32 %v1237, 0.0
    %v1287 = vmax.f32 %v1239, 0.0
    %v1288 = vmax.f32 %v1280, 0.0
    %v1289 = vmax.f32 %v1241, 0.0
    %v1290 = vmax.f32 %v1243, 0.0
    %v1291 = vmax.f32 %v1283, 0.0
    %v1292 = vld [vmem:[%s7] sm:$0x3]
    %v1293 = vpack.c.bf16 %v1289, %v1286
    %v1294 = vpack.c.bf16 %v1290, %v1287
    %v1295 = vpack.c.bf16 %v1291, %v1288
    %v1296 = vld [vmem:[%s8] sm:$0xf]
    %1298 = vset.pattern.permute.xlu0 0
    %1299 = vperm.xlu0 %1298, %v1296
    %v1300 = vpop.permute.xlu0 %1299
    %vm1302 = vcmask 130048
    %v1304 = vsel %vm1302, %v1292, 0
    %1306 = vmatprep.subr.bf16.mxu0 %v1294
    %1307 = vmatpush1.bf16.msra.mxu0 %v1293
    %1308 = vmatprep.subr.bf16.mxu0 0
    %1309 = vmatpush1.bf16.msra.mxu0 0
    %1310 = vmatprep.subr.bf16.mxu0 0
    %1311 = vmatpush1.bf16.msra.mxu0 0
    %1312 = vmatprep.subr.bf16.mxu0 0
    %1313 = vmatpush1.bf16.msra.mxu0 0
    %1314 = vmatprep.subr.bf16.mxu0 0
    %1315 = vmatpush1.bf16.msra.mxu0 0
    %1316 = vmatprep.subr.bf16.mxu0 0
    %1317 = vmatpush1.bf16.msra.mxu0 0
    %1318 = vmatprep.subr.bf16.mxu0 0
    %1319 = vmatpush1.bf16.msra.mxu0 0
    %1320 = vmatprep.subr.bf16.mxu0 0
    %1321 = vmatpush1.bf16.msra.mxu0 0
    %1322 = vmatprep.subr.bf16.mxu0 0
    %1323 = vmatpush1.bf16.msra.mxu0 0
    %1324 = vmatprep.subr.bf16.mxu0 0
    %1325 = vmatpush1.bf16.msra.mxu0 0
    %1326 = vmatprep.subr.bf16.mxu0 0
    %1327 = vmatpush1.bf16.msra.mxu0 0
    %1328 = vmatprep.subr.bf16.mxu0 0
    %1329 = vmatpush1.bf16.msra.mxu0 0
    %1330 = vmatprep.subr.bf16.mxu0 0
    %1331 = vmatpush1.bf16.msra.mxu0 0
    %1332 = vmatprep.subr.bf16.mxu0 0
    %1333 = vmatpush1.bf16.msra.mxu0 0
    %1334 = vmatprep.subr.bf16.mxu0 0
    %1335 = vmatpush1.bf16.msra.mxu0 0
    %1336 = vmatprep.subr.bf16.mxu0 0
    %1337 = vmatpush1.bf16.msra.mxu0 0
    %1338 = vmatprep.mubr.bf16.mxu0 0
    %1339 = vmatmul.mubr.bf16.gmra.mrb[0].mxu0 %v1304
    %v1340 = vpop.f32.mrb[0].mxu0
    %v1341 = vadd.f32 %v1300, %v1340
    %v1342 = vpop.f32.mrb[0].mxu0
    %v1343 = vadd.f32 %v1300, %v1342
    %v1344 = vpop.f32.mrb[0].mxu0
    %v1345 = vpop.f32.mrb[0].mxu0
    %1346 = vdwg.mxu0
    %1347 = vmatprep.subr.bf16.mxu0 0
    %1348 = vmatpush1.bf16.msra.mxu0 %v1295
    %1349 = vmatprep.subr.bf16.mxu0 0
    %1350 = vmatpush1.bf16.msra.mxu0 0
    %1351 = vmatprep.subr.bf16.mxu0 0
    %1352 = vmatpush1.bf16.msra.mxu0 0
    %1353 = vmatprep.subr.bf16.mxu0 0
    %1354 = vmatpush1.bf16.msra.mxu0 0
    %1355 = vmatprep.subr.bf16.mxu0 0
    %1356 = vmatpush1.bf16.msra.mxu0 0
    %1357 = vmatprep.subr.bf16.mxu0 0
    %1358 = vmatpush1.bf16.msra.mxu0 0
    %1359 = vmatprep.subr.bf16.mxu0 0
    %1360 = vmatpush1.bf16.msra.mxu0 0
    %1361 = vmatprep.subr.bf16.mxu0 0
    %1362 = vmatpush1.bf16.msra.mxu0 0
    %1363 = vmatprep.subr.bf16.mxu0 0
    %1364 = vmatpush1.bf16.msra.mxu0 0
    %1365 = vmatprep.subr.bf16.mxu0 0
    %1366 = vmatpush1.bf16.msra.mxu0 0
    %1367 = vmatprep.subr.bf16.mxu0 0
    %1368 = vmatpush1.bf16.msra.mxu0 0
    %1369 = vmatprep.subr.bf16.mxu0 0
    %1370 = vmatpush1.bf16.msra.mxu0 0
    %1371 = vmatprep.subr.bf16.mxu0 0
    %1372 = vmatpush1.bf16.msra.mxu0 0
    %1373 = vmatprep.subr.bf16.mxu0 0
    %1374 = vmatpush1.bf16.msra.mxu0 0
    %1375 = vmatprep.subr.bf16.mxu0 0
    %1376 = vmatpush1.bf16.msra.mxu0 0
    %1377 = vmatprep.subr.bf16.mxu0 0
    %1378 = vmatpush1.bf16.msra.mxu0 0
    %1379 = vmatprep.mubr.bf16.mxu0 0
    %1380 = vmatmul.mubr.bf16.gmra.mrb[0].mxu0 %v1304
    %v1381 = vpop.f32.mrb[0].mxu0
    %v1382 = vadd.f32 %v1300, %v1381
    %v1383 = vpop.f32.mrb[0].mxu0
    %v1384 = vpop.f32.mrb[0].mxu0
    %v1385 = vpop.f32.mrb[0].mxu0
    %1386 = vdwg.mxu0
    %v1387 = vmax.f32 %v1341, 0.0
    %v1388 = vmax.f32 %v1343, 0.0
    %v1389 = vmax.f32 %v1382, 0.0
    %v1390 = vld [vmem:[%s9] sm:$0xf]
    %1392 = vset.pattern.permute.xlu0 0
    %1393 = vperm.xlu0 %1392, %v1390
    %v1394 = vpop.permute.xlu0 %1393
    %v1396 = vmul.f32 %v1387, %v1394
    %v1397 = vmul.f32 %v1388, %v1394
    %v1398 = vmul.f32 %v1389, %v1394
    %v1399 = vsel %vm401, %v1396, 0.0
    %v1400 = vrot.slane %v1399, 4
    %v1401 = vadd.f32 %v1399, %v1400
    %v1402 = vrot.slane %v1401, 2
    %v1403 = vadd.f32 %v1401, %v1402
    %v1404 = vrot.slane %v1403, 1
    %v1405 = vadd.f32 %v1403, %v1404
    %v1406 = vsel %vm401, %v1397, 0.0
    %v1407 = vrot.slane %v1406, 4
    %v1408 = vadd.f32 %v1406, %v1407
    %v1409 = vrot.slane %v1408, 2
    %v1410 = vadd.f32 %v1408, %v1409
    %v1411 = vrot.slane %v1410, 1
    %v1412 = vadd.f32 %v1410, %v1411
    %v1413 = vsel %vm401, %v1398, 0.0
    %v1414 = vrot.slane %v1413, 4
    %v1415 = vadd.f32 %v1413, %v1414
    %v1416 = vrot.slane %v1415, 2
    %v1417 = vadd.f32 %v1415, %v1416
    %v1418 = vrot.slane %v1417, 1
    %v1419 = vadd.f32 %v1417, %v1418
    %v1420 = vld [vmem:[#allocation2] sm:$0x1]
    %1422 = vset.pattern.permute.xlu0 0
    %1423 = vperm.xlu0 %1422, %v1420
    %v1424 = vpop.permute.xlu0 %1423
    %v1426 = vlaneseq
    %v1427 = vshrl.u32 %v1426, 7
    %v1428 = vsub.s32 0, %v1427
    %v1429 = vrot.slane %v1424, %v1428
    %v1430 = vadd.f32 %v1405, %v1429
    %v1431 = vadd.f32 %v1412, %v1429
    %v1432 = vadd.f32 %v1419, %v1429
    %v1436 = vcombine.low %v1430, %v1431
    %v1438 = vunpack.c.l.s4 1966171168
    %v1439 = vunpack.c.0.s8 %v1438
    %v1440 = vlaneseq
    %v1441 = vshrl.u32 %v1440, 7
    %v1442 = vsub.s32 %v1439, %v1441
    %v1443 = vrot.slane %v1436, %v1442
    %v1445 = vunpack.c.l.s4 1966171168
    %v1446 = vunpack.c.0.s8 %v1445
    %v1447 = vlaneseq
    %v1448 = vshrl.u32 %v1447, 7
    %v1449 = vsub.s32 %v1446, %v1448
    %v1450 = vrot.slane %v1432, %v1449
    %v1451 = vcombine.low %v1443, %v1450
    %v1453 = vunpack.c.l.s4 1966171168
    %v1454 = vunpack.c.0.s8 %v1453
    %v1455 = vlaneseq
    %v1456 = vshrl.u32 %v1455, 7
    %v1457 = vsub.s32 %v1454, %v1456
    %v1458 = vrot.slane %v1451, %v1457
    %v1460 = vlaneseq
    %vm1461 = vcmp.ge.s32.totalorder %v1460, 0
    %vm1462 = vcmp.lt.s32.totalorder %v1460, 384
    %vm1463 = vmand %vm1461, %vm1462
    %1464 = vst.msk [vmem:[#allocation3] sm:$0x7] %vm1463, %v1458
    // Predicated region
    $region46: #{mlp_forward.1} parent=1 // pred_check
      _
    $region47: #{mlp_forward.1} parent=1 // pred_check_branch
      %1466 = sbr.rel (0) target = $region49
    $region48: #{mlp_forward.1} parent=1 // pred_region
      %s1468 = ssub.s32 48, 48
      %1469 = vsyncadd [#allocation4], %s1468
      %s1471 = sshll.u32 [#allocation3], 4
      %s1472 = int_to_ptr.vmem [resolvable:$true] %s1471
      %1474 = dma.vmem_to_hbm [thread:$0]  %s1472, 48, %s11, [#allocation4]
    $region49: #{mlp_forward.1} parent=1 // pred_fallthru
      _
    // Predicated region
    $region50: #{mlp_forward.1} parent=1 // pred_check
      _
    $region51: #{mlp_forward.1} parent=1 // pred_check_branch
      %1476 = sbr.rel (0) target = $region53
    $region52: #{mlp_forward.1} parent=1 // pred_region
      %1477 = dma.done [#allocation4], 48
    $region53: #{mlp_forward.1} parent=1 // pred_fallthru
      _
    %1478 = vsyncpa [#allocation4], 1

</llo_original>
